<compile_context>
chip_gen: v7x
topology: tpu7x:2x2x1
jax: 0.10.0
libtpu: 0.0.40
codegen_flags: <defaults>
</compile_context>

<pallas_src>
import functools
import math

import jax
import jax.numpy as jnp
from jax import lax
from jax.experimental import pallas as pl
from jax.experimental.pallas import tpu as pltpu


def _round_up(x, m):
    return (x + m - 1) // m * m


# ---------------------------------------------------------------------------
# Fused kernel: per grid step (b, qi, ki)
#   - at ki==0: project the query tile (x_q @ Wq + bq) into VMEM scratch,
#     reset the online-softmax state,
#   - every step: project the current K/V tile (x_kv @ [Wk|Wv] + [bk|bv]),
#     compute scores, apply masked_fill(mask==0, 1e-6), run one online-softmax
#     update,
#   - at ki==last: normalize the accumulator and write the output tile.
# ---------------------------------------------------------------------------
def fused_attention_kernel(x_q_ref, x_kv_ref, wq_ref, wkv_ref, bq_ref, bkv_ref,
                           mask_ref, o_ref,
                           q_scr, m_scr, l_scr, acc_scr,
                           *, scale, dp, s_valid, tile_k, kv_padded):
    ki = pl.program_id(2)
    nk = pl.num_programs(2)

    @pl.when(ki == 0)
    def _init():
        # Project this query tile once per (b, qi); reuse across all KV tiles.
        q = jnp.dot(x_q_ref[0], wq_ref[...],
                    preferred_element_type=jnp.float32) + bq_ref[...]
        q_scr[...] = q
        m_scr[...] = jnp.full_like(m_scr, -jnp.inf)
        l_scr[...] = jnp.zeros_like(l_scr)
        acc_scr[...] = jnp.zeros_like(acc_scr)

    # Project the current K/V tile on the fly (never materialized in HBM).
    kv = jnp.dot(x_kv_ref[0], wkv_ref[...],
                 preferred_element_type=jnp.float32) + bkv_ref[...]
    k = kv[:, :dp].astype(jnp.bfloat16)
    v = kv[:, dp:].astype(jnp.bfloat16)

    # scores = (q @ k^T) * scale: contract the last dims directly (no XLU
    # transpose); bf16 operands, f32 accumulation.
    scores = lax.dot_general(
        q_scr[...].astype(jnp.bfloat16), k,
        dimension_numbers=(((1,), (1,)), ((), ())),
        preferred_element_type=jnp.float32) * jnp.float32(scale)   # (TQ, TK)

    # masked_fill(mask == 0, 1e-6) on the scores, exactly as the reference
    # (masked positions still get ~uniform softmax weight — faithful to spec).
    scores = jnp.where(mask_ref[0] == 0, jnp.float32(1e-6), scores)

    if kv_padded:
        # Exclude sequence-padding keys (not part of the original problem).
        col = ki * tile_k + lax.broadcasted_iota(jnp.int32, scores.shape, 1)
        scores = jnp.where(col < s_valid, scores, jnp.float32(-1e30))

    # Online (flash) softmax update.
    m_prev = m_scr[...]
    m_new = jnp.maximum(m_prev, jnp.max(scores, axis=-1, keepdims=True))
    alpha = jnp.exp(m_prev - m_new)
    p = jnp.exp(scores - m_new)
    l_scr[...] = alpha * l_scr[...] + jnp.sum(p, axis=-1, keepdims=True)
    acc_scr[...] = alpha * acc_scr[...] + jnp.dot(
        p.astype(jnp.bfloat16), v, preferred_element_type=jnp.float32)
    m_scr[...] = m_new

    @pl.when(ki == nk - 1)
    def _finalize():
        li = l_scr[...]
        r = pl.reciprocal(li, approx=True)     # EUP vrcp (own bundle slot)
        r = r * (2.0 - li * r)                 # one Newton step -> ~f32 1/l
        o_ref[0] = (acc_scr[...] * r).astype(o_ref.dtype)


# ---------------------------------------------------------------------------
# Wrapper
# ---------------------------------------------------------------------------
def attention_forward(x, mask, wq, bq, wk, bk, wv, bv):
    """x: (B, S, Din) f32; mask: (B, S, S) int; w*: (Din, Dout); b*: (Dout,)."""
    B, S, Din = x.shape
    Dout = wq.shape[1]
    Dp = _round_up(Dout, 128)                  # lane-dense q/k/v/output lanes

    # ---- sequence tiling (shared Q-tile / KV-tile size) ----
    T = _round_up(S, 8) if S <= 256 else 256
    Sp = _round_up(S, T)
    NQ = NK = Sp // T
    kv_padded = Sp != S
    if kv_padded:
        x = jnp.pad(x, ((0, 0), (0, Sp - S), (0, 0)))
        mask = jnp.pad(mask, ((0, 0), (0, Sp - S), (0, Sp - S)),
                       constant_values=1)

    # ---- bf16 MXU operands (f32 accumulation happens in-kernel) ----
    x_c = x.astype(jnp.bfloat16)

    def pad_w(w):
        return jnp.pad(w.astype(jnp.bfloat16), ((0, 0), (0, Dp - Dout)))

    def pad_b(b):
        return jnp.pad(b.astype(jnp.float32), (0, Dp - Dout))

    wq_p = pad_w(wq)                                          # (Din, Dp)   bf16
    wkv_p = jnp.concatenate([pad_w(wk), pad_w(wv)], axis=1)   # (Din, 2*Dp) bf16
    bq_p = pad_b(bq).reshape(1, Dp)                           # (1, Dp)     f32
    bkv_p = jnp.concatenate([pad_b(bk), pad_b(bv)]).reshape(1, 2 * Dp)

    # ---- per-generation VMEM budget (v5e/v6e ~96 MiB, v7x ~48 MiB) ----
    try:
        vmem_cap = int(pltpu.get_tpu_info().vmem_capacity_bytes)
    except Exception:
        vmem_cap = 64 * 1024 * 1024
    vmem_limit = min(100 * 1024 * 1024, (vmem_cap * 3) // 4)

    scale = 1.0 / math.sqrt(Dout)              # d_k = original out_dim

    # ---- advisory cost estimate so XLA schedules around the custom call ----
    flops = int(2 * B * Sp * Din * Dp                # Q projection
                + 4 * B * NQ * Sp * Din * Dp         # K/V projection per q-tile
                + 4 * B * Sp * Sp * Dp)              # QK^T and P@V
    transcendentals = int(B * Sp * Sp + B * Sp * NK)
    bytes_accessed = int(B * Sp * Din * 2 * (1 + NQ)
                         + B * Sp * Sp * mask.dtype.itemsize
                         + Din * 3 * Dp * 2 + 3 * Dp * 4
                         + B * Sp * Dp * 4)
    cost = pl.CostEstimate(flops=flops, transcendentals=transcendentals,
                           bytes_accessed=bytes_accessed)

    kernel = functools.partial(fused_attention_kernel, scale=scale, dp=Dp,
                               s_valid=S, tile_k=T, kv_padded=kv_padded)

    def build(single_buffer_consts):
        if single_buffer_consts:
            def const_spec(shape):
                return pl.BlockSpec(shape, lambda b, qi, ki: (0, 0),
                                    pipeline_mode=pl.Buffered(1))
        else:
            def const_spec(shape):
                return pl.BlockSpec(shape, lambda b, qi, ki: (0, 0))

        return pl.pallas_call(
            kernel,
            out_shape=jax.ShapeDtypeStruct((B, Sp, Dp), jnp.float32),
            grid_spec=pltpu.PrefetchScalarGridSpec(
                num_scalar_prefetch=0,
                grid=(B, NQ, NK),
                in_specs=[
                    pl.BlockSpec((1, T, Din), lambda b, qi, ki: (b, qi, 0)),  # x (Q rows)
                    pl.BlockSpec((1, T, Din), lambda b, qi, ki: (b, ki, 0)),  # x (K/V rows)
                    const_spec((Din, Dp)),           # W_q            (constant index)
                    const_spec((Din, 2 * Dp)),       # [W_k | W_v]    (constant index)
                    const_spec((1, Dp)),             # b_q
                    const_spec((1, 2 * Dp)),         # [b_k | b_v]
                    pl.BlockSpec((1, T, T), lambda b, qi, ki: (b, qi, ki)),   # mask tile
                ],
                out_specs=pl.BlockSpec((1, T, Dp), lambda b, qi, ki: (b, qi, 0)),
                scratch_shapes=[
                    pltpu.VMEM((T, Dp), jnp.float32),   # cached projected Q tile
                    pltpu.VMEM((T, 1), jnp.float32),    # running max  (m)
                    pltpu.VMEM((T, 1), jnp.float32),    # running denom (l)
                    pltpu.VMEM((T, Dp), jnp.float32),   # output accumulator
                ]),
            compiler_params=pltpu.CompilerParams(
                dimension_semantics=("parallel", "parallel", "arbitrary"),
                vmem_limit_bytes=vmem_limit),
            cost_estimate=cost,
        )

    args = (x_c, x_c, wq_p, wkv_p, bq_p, bkv_p, mask)

    out_p, err = None, None
    for single_buf in (True, False):     # fall back if Buffered(1) unsupported
        try:
            out_p = jax.block_until_ready(build(single_buf)(*args))
            break
        except Exception as e:           # noqa: BLE001 - retry without single-buffer
            err = e
            out_p = None
    if out_p is None:
        raise err

    # Drop padded query rows and zero-padded lanes.
    return out_p[:, :S, :Dout]


# ---------------------------------------------------------------------------
# Pure-JAX (f32) reference mirroring the PyTorch forward exactly.
# ---------------------------------------------------------------------------
def attention_ref(x, mask, wq, bq, wk, bk, wv, bv):
    q = x @ wq + bq
    k = x @ wk + bk
    v = x @ wv + bv
    d_k = q.shape[-1]
    scores = q @ jnp.swapaxes(k, -2, -1) / math.sqrt(d_k)
    scores = jnp.where(mask == 0, 1e-6, scores)
    p = jax.nn.softmax(scores, axis=-1)
    return p @ v


if __name__ == "__main__":
    B, S, IN_DIM, OUT_DIM = 2, 8, 32, 32

    key = jax.random.PRNGKey(0)
    kx, kmask, kq, kk, kv, kbq, kbk, kbv = jax.random.split(key, 8)

    x = jax.random.normal(kx, (B, S, IN_DIM), dtype=jnp.float32)
    mask = (jax.random.uniform(kmask, (B, S, S)) > 0.3).astype(jnp.int32)

    # PyTorch Linear stores W as (out, in); keep (in, out) so x @ W matches
    # x @ W_pt.T. Uniform(-1/sqrt(in), 1/sqrt(in)) init, deterministic.
    bound = 1.0 / math.sqrt(IN_DIM)
    wq = jax.random.uniform(kq, (IN_DIM, OUT_DIM), minval=-bound, maxval=bound)
    wk = jax.random.uniform(kk, (IN_DIM, OUT_DIM), minval=-bound, maxval=bound)
    wv = jax.random.uniform(kv, (IN_DIM, OUT_DIM), minval=-bound, maxval=bound)
    bq = jax.random.uniform(kbq, (OUT_DIM,), minval=-bound, maxval=bound)
    bk = jax.random.uniform(kbk, (OUT_DIM,), minval=-bound, maxval=bound)
    bv = jax.random.uniform(kbv, (OUT_DIM,), minval=-bound, maxval=bound)

    out = attention_forward(x, mask, wq, bq, wk, bk, wv, bv)
    out = jax.block_until_ready(out)

    ref = attention_ref(x, mask, wq, bq, wk, bk, wv, bv)
    assert out.shape == (B, S, OUT_DIM)
    # Tolerance reflects bf16 MXU operands (f32 accumulation) vs. the f32
    # reference; observed error is well below this bound at these shapes.
    assert jnp.allclose(out, ref, atol=3e-2, rtol=3e-2), (
        f"max abs err = {jnp.max(jnp.abs(out - ref))}")

    print("KERNEL_OK")
</pallas_src>

<mosaic_0001>
module attributes {stable_mosaic.version = 11 : i64} {
  func.func @fused_attention_kernel(%arg0: i32, %arg1: i32, %arg2: i32, %arg3: memref<1x8x32xbf16, #tpu.memory_space<vmem>>, %arg4: memref<1x8x32xbf16, #tpu.memory_space<vmem>>, %arg5: memref<32x128xbf16, #tpu.memory_space<vmem>>, %arg6: memref<32x256xbf16, #tpu.memory_space<vmem>>, %arg7: memref<1x128xf32, #tpu.memory_space<vmem>>, %arg8: memref<1x256xf32, #tpu.memory_space<vmem>>, %arg9: memref<1x8x8xi32, #tpu.memory_space<vmem>>, %arg10: memref<1x8x128xf32, #tpu.memory_space<vmem>>, %arg11: memref<8x128xf32, #tpu.memory_space<vmem>>, %arg12: memref<8x1xf32, #tpu.memory_space<vmem>>, %arg13: memref<8x1xf32, #tpu.memory_space<vmem>>, %arg14: memref<8x128xf32, #tpu.memory_space<vmem>>) attributes {dimension_semantics = [#tpu.dimension_semantics<parallel>, #tpu.dimension_semantics<parallel>, #tpu.dimension_semantics<arbitrary>], iteration_bounds = array<i64: 2, 1, 1>, scalar_prefetch = 0 : i64, scratch_operands = 4 : i64, tpu.core_type = #tpu.core_type<tc>, window_params = [{transform_indices = @transform_0, window_bounds = array<i64: 1, 8, 32>}, {transform_indices = @transform_1, window_bounds = array<i64: 1, 8, 32>}, {pipeline_mode = #tpu.pipeline_mode<synchronous>, transform_indices = @transform_2, window_bounds = array<i64: 32, 128>}, {pipeline_mode = #tpu.pipeline_mode<synchronous>, transform_indices = @transform_3, window_bounds = array<i64: 32, 256>}, {pipeline_mode = #tpu.pipeline_mode<synchronous>, transform_indices = @transform_4, window_bounds = array<i64: 1, 128>}, {pipeline_mode = #tpu.pipeline_mode<synchronous>, transform_indices = @transform_5, window_bounds = array<i64: 1, 256>}, {transform_indices = @transform_6, window_bounds = array<i64: 1, 8, 8>}, {transform_indices = @transform_7, window_bounds = array<i64: 1, 8, 128>}]} {
    %c0_i32 = arith.constant 0 : i32
    %0 = arith.cmpi eq, %arg2, %c0_i32 : i32
    %1 = arith.extui %0 : i1 to i32
    %c0_i32_0 = arith.constant 0 : i32
    %2 = arith.cmpi ne, %1, %c0_i32_0 : i32
    scf.if %2 {
      %c0_33 = arith.constant 0 : index
      %c0_34 = arith.constant 0 : index
      %c0_35 = arith.constant 0 : index
      %51 = vector.load %arg3[%c0_33, %c0_34, %c0_35] : memref<1x8x32xbf16, #tpu.memory_space<vmem>>, vector<1x8x32xbf16>
      %52 = vector.shape_cast %51 : vector<1x8x32xbf16> to vector<8x32xbf16>
      %c0_36 = arith.constant 0 : index
      %c0_37 = arith.constant 0 : index
      %53 = vector.load %arg5[%c0_36, %c0_37] : memref<32x128xbf16, #tpu.memory_space<vmem>>, vector<32x128xbf16>
      %cst_38 = arith.constant dense<0.000000e+00> : vector<8x128xf32>
      %54 = tpu.matmul %52, %53, %cst_38 {dimension_numbers = #tpu.dot_dimension_numbers<[1], [0], [0], [1], [0, 0, 1, 1], [], []>} : vector<8x32xbf16>, vector<32x128xbf16>, vector<8x128xf32> -> vector<8x128xf32>
      %c0_39 = arith.constant 0 : index
      %c0_40 = arith.constant 0 : index
      %55 = vector.load %arg7[%c0_39, %c0_40] : memref<1x128xf32, #tpu.memory_space<vmem>>, vector<1x128xf32>
      %56 = vector.broadcast %55 : vector<1x128xf32> to vector<8x128xf32>
      %57 = arith.addf %54, %56 : vector<8x128xf32>
      %c0_41 = arith.constant 0 : index
      %c0_42 = arith.constant 0 : index
      %58 = vector.load %arg11[%c0_41, %c0_42] : memref<8x128xf32, #tpu.memory_space<vmem>>, vector<8x128xf32>
      tpu.vector_store %arg11[%c0_41, %c0_42], %57 {strides = array<i32>} : memref<8x128xf32, #tpu.memory_space<vmem>>, vector<8x128xf32>,
      %cst_43 = arith.constant 0xFF800000 : f32
      %59 = vector.broadcast %cst_43 : f32 to vector<8x1xf32>
      %c0_44 = arith.constant 0 : index
      %c0_45 = arith.constant 0 : index
      %60 = vector.load %arg12[%c0_44, %c0_45] : memref<8x1xf32, #tpu.memory_space<vmem>>, vector<8x1xf32>
      tpu.vector_store %arg12[%c0_44, %c0_45], %59 {strides = array<i32>} : memref<8x1xf32, #tpu.memory_space<vmem>>, vector<8x1xf32>,
      %cst_46 = arith.constant 0.000000e+00 : f32
      %61 = vector.broadcast %cst_46 : f32 to vector<8x1xf32>
      %c0_47 = arith.constant 0 : index
      %c0_48 = arith.constant 0 : index
      %62 = vector.load %arg13[%c0_47, %c0_48] : memref<8x1xf32, #tpu.memory_space<vmem>>, vector<8x1xf32>
      tpu.vector_store %arg13[%c0_47, %c0_48], %61 {strides = array<i32>} : memref<8x1xf32, #tpu.memory_space<vmem>>, vector<8x1xf32>,
      %cst_49 = arith.constant 0.000000e+00 : f32
      %63 = vector.broadcast %cst_49 : f32 to vector<8x128xf32>
      %c0_50 = arith.constant 0 : index
      %c0_51 = arith.constant 0 : index
      %64 = vector.load %arg14[%c0_50, %c0_51] : memref<8x128xf32, #tpu.memory_space<vmem>>, vector<8x128xf32>
      tpu.vector_store %arg14[%c0_50, %c0_51], %63 {strides = array<i32>} : memref<8x128xf32, #tpu.memory_space<vmem>>, vector<8x128xf32>,
    } else {
    }
    %c0 = arith.constant 0 : index
    %c0_1 = arith.constant 0 : index
    %c0_2 = arith.constant 0 : index
    %3 = vector.load %arg4[%c0, %c0_1, %c0_2] : memref<1x8x32xbf16, #tpu.memory_space<vmem>>, vector<1x8x32xbf16>
    %4 = vector.shape_cast %3 : vector<1x8x32xbf16> to vector<8x32xbf16>
    %c0_3 = arith.constant 0 : index
    %c0_4 = arith.constant 0 : index
    %5 = vector.load %arg6[%c0_3, %c0_4] : memref<32x256xbf16, #tpu.memory_space<vmem>>, vector<32x256xbf16>
    %cst = arith.constant dense<0.000000e+00> : vector<8x256xf32>
    %6 = tpu.matmul %4, %5, %cst {dimension_numbers = #tpu.dot_dimension_numbers<[1], [0], [0], [1], [0, 0, 1, 1], [], []>} : vector<8x32xbf16>, vector<32x256xbf16>, vector<8x256xf32> -> vector<8x256xf32>
    %c0_5 = arith.constant 0 : index
    %c0_6 = arith.constant 0 : index
    %7 = vector.load %arg8[%c0_5, %c0_6] : memref<1x256xf32, #tpu.memory_space<vmem>>, vector<1x256xf32>
    %8 = vector.broadcast %7 : vector<1x256xf32> to vector<8x256xf32>
    %9 = arith.addf %6, %8 : vector<8x256xf32>
    %10 = vector.extract_strided_slice %9 {offsets = [0, 0], sizes = [8, 128], strides = [1, 1]} : vector<8x256xf32> to vector<8x128xf32>
    %11 = arith.truncf %10 : vector<8x128xf32> to vector<8x128xbf16>
    %12 = vector.extract_strided_slice %9 {offsets = [0, 128], sizes = [8, 128], strides = [1, 1]} : vector<8x256xf32> to vector<8x128xf32>
    %13 = arith.truncf %12 : vector<8x128xf32> to vector<8x128xbf16>
    %c0_7 = arith.constant 0 : index
    %c0_8 = arith.constant 0 : index
    %14 = vector.load %arg11[%c0_7, %c0_8] : memref<8x128xf32, #tpu.memory_space<vmem>>, vector<8x128xf32>
    %15 = arith.truncf %14 : vector<8x128xf32> to vector<8x128xbf16>
    %cst_9 = arith.constant dense<0.000000e+00> : vector<8x8xf32>
    %16 = tpu.matmul %15, %11, %cst_9 {dimension_numbers = #tpu.dot_dimension_numbers<[1], [1], [0], [0], [0, 0, 1, 0], [], []>} : vector<8x128xbf16>, vector<8x128xbf16>, vector<8x8xf32> -> vector<8x8xf32>
    %cst_10 = arith.constant 0.176776692 : f32
    %17 = vector.broadcast %cst_10 : f32 to vector<8x8xf32>
    %18 = arith.mulf %16, %17 : vector<8x8xf32>
    %c0_11 = arith.constant 0 : index
    %c0_12 = arith.constant 0 : index
    %c0_13 = arith.constant 0 : index
    %19 = vector.load %arg9[%c0_11, %c0_12, %c0_13] : memref<1x8x8xi32, #tpu.memory_space<vmem>>, vector<1x8x8xi32>
    %20 = vector.shape_cast %19 : vector<1x8x8xi32> to vector<8x8xi32>
    %c0_i32_14 = arith.constant 0 : i32
    %21 = vector.broadcast %c0_i32_14 : i32 to vector<8x8xi32>
    %22 = arith.cmpi eq, %20, %21 : vector<8x8xi32>
    %cst_15 = arith.constant 9.99999997E-7 : f32
    %23 = vector.broadcast %cst_15 : f32 to vector<8x8xf32>
    %24 = arith.select %22, %23, %18 : vector<8x8xi1>, vector<8x8xf32>
    %c0_16 = arith.constant 0 : index
    %c0_17 = arith.constant 0 : index
    %25 = vector.load %arg12[%c0_16, %c0_17] : memref<8x1xf32, #tpu.memory_space<vmem>>, vector<8x1xf32>
    %cst_18 = arith.constant dense<0xFF800000> : vector<8xf32>
    %26 = vector.multi_reduction <maximumf>, %24, %cst_18 [1] : vector<8x8xf32> to vector<8xf32>
    %27 = vector.shape_cast %26 : vector<8xf32> to vector<8x1xf32>
    %28 = arith.maximumf %25, %27 : vector<8x1xf32>
    %29 = arith.subf %25, %28 : vector<8x1xf32>
    %30 = math.exp %29 : vector<8x1xf32>
    %31 = vector.broadcast %28 : vector<8x1xf32> to vector<8x8xf32>
    %32 = arith.subf %24, %31 : vector<8x8xf32>
    %33 = math.exp %32 : vector<8x8xf32>
    %c0_19 = arith.constant 0 : index
    %c0_20 = arith.constant 0 : index
    %34 = vector.load %arg13[%c0_19, %c0_20] : memref<8x1xf32, #tpu.memory_space<vmem>>, vector<8x1xf32>
    %35 = arith.mulf %30, %34 : vector<8x1xf32>
    %cst_21 = arith.constant dense<0.000000e+00> : vector<8xf32>
    %36 = vector.multi_reduction <add>, %33, %cst_21 [1] : vector<8x8xf32> to vector<8xf32>
    %37 = vector.shape_cast %36 : vector<8xf32> to vector<8x1xf32>
    %38 = arith.addf %35, %37 : vector<8x1xf32>
    %c0_22 = arith.constant 0 : index
    %c0_23 = arith.constant 0 : index
    %39 = vector.load %arg13[%c0_22, %c0_23] : memref<8x1xf32, #tpu.memory_space<vmem>>, vector<8x1xf32>
    tpu.vector_store %arg13[%c0_22, %c0_23], %38 {strides = array<i32>} : memref<8x1xf32, #tpu.memory_space<vmem>>, vector<8x1xf32>,
    %c0_24 = arith.constant 0 : index
    %c0_25 = arith.constant 0 : index
    %40 = vector.load %arg14[%c0_24, %c0_25] : memref<8x128xf32, #tpu.memory_space<vmem>>, vector<8x128xf32>
    %41 = vector.broadcast %30 : vector<8x1xf32> to vector<8x128xf32>
    %42 = arith.mulf %41, %40 : vector<8x128xf32>
    %43 = arith.truncf %33 : vector<8x8xf32> to vector<8x8xbf16>
    %cst_26 = arith.constant dense<0.000000e+00> : vector<8x128xf32>
    %44 = tpu.matmul %43, %13, %cst_26 {dimension_numbers = #tpu.dot_dimension_numbers<[1], [0], [0], [1], [0, 0, 1, 1], [], []>} : vector<8x8xbf16>, vector<8x128xbf16>, vector<8x128xf32> -> vector<8x128xf32>
    %45 = arith.addf %42, %44 : vector<8x128xf32>
    %c0_27 = arith.constant 0 : index
    %c0_28 = arith.constant 0 : index
    %46 = vector.load %arg14[%c0_27, %c0_28] : memref<8x128xf32, #tpu.memory_space<vmem>>, vector<8x128xf32>
    tpu.vector_store %arg14[%c0_27, %c0_28], %45 {strides = array<i32>} : memref<8x128xf32, #tpu.memory_space<vmem>>, vector<8x128xf32>,
    %c0_29 = arith.constant 0 : index
    %c0_30 = arith.constant 0 : index
    %47 = vector.load %arg12[%c0_29, %c0_30] : memref<8x1xf32, #tpu.memory_space<vmem>>, vector<8x1xf32>
    tpu.vector_store %arg12[%c0_29, %c0_30], %28 {strides = array<i32>} : memref<8x1xf32, #tpu.memory_space<vmem>>, vector<8x1xf32>,
    %c0_i32_31 = arith.constant 0 : i32
    %48 = arith.cmpi eq, %arg2, %c0_i32_31 : i32
    %49 = arith.extui %48 : i1 to i32
    %c0_i32_32 = arith.constant 0 : i32
    %50 = arith.cmpi ne, %49, %c0_i32_32 : i32
    scf.if %50 {
      %c0_33 = arith.constant 0 : index
      %c0_34 = arith.constant 0 : index
      %51 = vector.load %arg13[%c0_33, %c0_34] : memref<8x1xf32, #tpu.memory_space<vmem>>, vector<8x1xf32>
      %52 = tpu.reciprocal %51 {approx = true} : vector<8x1xf32> -> vector<8x1xf32>
      %53 = arith.mulf %51, %52 : vector<8x1xf32>
      %cst_35 = arith.constant 2.000000e+00 : f32
      %54 = vector.broadcast %cst_35 : f32 to vector<8x1xf32>
      %55 = arith.subf %54, %53 : vector<8x1xf32>
      %56 = arith.mulf %52, %55 : vector<8x1xf32>
      %c0_36 = arith.constant 0 : index
      %c0_37 = arith.constant 0 : index
      %57 = vector.load %arg14[%c0_36, %c0_37] : memref<8x128xf32, #tpu.memory_space<vmem>>, vector<8x128xf32>
      %58 = vector.broadcast %56 : vector<8x1xf32> to vector<8x128xf32>
      %59 = arith.mulf %57, %58 : vector<8x128xf32>
      %c0_38 = arith.constant 0 : index
      %c0_39 = arith.constant 0 : index
      %c0_40 = arith.constant 0 : index
      %60 = vector.load %arg10[%c0_38, %c0_39, %c0_40] : memref<1x8x128xf32, #tpu.memory_space<vmem>>, vector<1x8x128xf32>
      %61 = vector.shape_cast %60 : vector<1x8x128xf32> to vector<8x128xf32>
      %62 = vector.shape_cast %59 : vector<8x128xf32> to vector<1x8x128xf32>
      tpu.vector_store %arg10[%c0_38, %c0_39, %c0_40], %62 {strides = array<i32>} : memref<1x8x128xf32, #tpu.memory_space<vmem>>, vector<1x8x128xf32>,
    } else {
    }
    return
  }
  func.func @transform_0(%arg0: i32, %arg1: i32, %arg2: i32) -> (i32, i32, i32) {
    %c0_i32 = arith.constant 0 : i32
    %c0_i32_0 = arith.constant 0 : i32
    return %arg0, %arg1, %c0_i32 : i32, i32, i32
  }
  func.func @transform_1(%arg0: i32, %arg1: i32, %arg2: i32) -> (i32, i32, i32) {
    %c0_i32 = arith.constant 0 : i32
    %c0_i32_0 = arith.constant 0 : i32
    return %arg0, %arg2, %c0_i32 : i32, i32, i32
  }
  func.func @transform_2(%arg0: i32, %arg1: i32, %arg2: i32) -> (i32, i32) {
    %c0_i32 = arith.constant 0 : i32
    %c0_i32_0 = arith.constant 0 : i32
    %c0_i32_1 = arith.constant 0 : i32
    return %c0_i32, %c0_i32_0 : i32, i32
  }
  func.func @transform_3(%arg0: i32, %arg1: i32, %arg2: i32) -> (i32, i32) {
    %c0_i32 = arith.constant 0 : i32
    %c0_i32_0 = arith.constant 0 : i32
    %c0_i32_1 = arith.constant 0 : i32
    return %c0_i32, %c0_i32_0 : i32, i32
  }
  func.func @transform_4(%arg0: i32, %arg1: i32, %arg2: i32) -> (i32, i32) {
    %c0_i32 = arith.constant 0 : i32
    %c0_i32_0 = arith.constant 0 : i32
    %c0_i32_1 = arith.constant 0 : i32
    return %c0_i32, %c0_i32_0 : i32, i32
  }
  func.func @transform_5(%arg0: i32, %arg1: i32, %arg2: i32) -> (i32, i32) {
    %c0_i32 = arith.constant 0 : i32
    %c0_i32_0 = arith.constant 0 : i32
    %c0_i32_1 = arith.constant 0 : i32
    return %c0_i32, %c0_i32_0 : i32, i32
  }
  func.func @transform_6(%arg0: i32, %arg1: i32, %arg2: i32) -> (i32, i32, i32) {
    %c0_i32 = arith.constant 0 : i32
    return %arg0, %arg1, %arg2 : i32, i32, i32
  }
  func.func @transform_7(%arg0: i32, %arg1: i32, %arg2: i32) -> (i32, i32, i32) {
    %c0_i32 = arith.constant 0 : i32
    %c0_i32_0 = arith.constant 0 : i32
    return %arg0, %arg1, %c0_i32 : i32, i32, i32
  }
}

module attributes {stable_mosaic.version = 11 : i64} {
  func.func @fused_attention_kernel(%arg0: i32, %arg1: i32, %arg2: i32, %arg3: memref<1x8x32xbf16, #tpu.memory_space<vmem>>, %arg4: memref<1x8x32xbf16, #tpu.memory_space<vmem>>, %arg5: memref<32x128xbf16, #tpu.memory_space<vmem>>, %arg6: memref<32x256xbf16, #tpu.memory_space<vmem>>, %arg7: memref<1x128xf32, #tpu.memory_space<vmem>>, %arg8: memref<1x256xf32, #tpu.memory_space<vmem>>, %arg9: memref<1x8x8xi32, #tpu.memory_space<vmem>>, %arg10: memref<1x8x128xf32, #tpu.memory_space<vmem>>, %arg11: memref<8x128xf32, #tpu.memory_space<vmem>>, %arg12: memref<8x1xf32, #tpu.memory_space<vmem>>, %arg13: memref<8x1xf32, #tpu.memory_space<vmem>>, %arg14: memref<8x128xf32, #tpu.memory_space<vmem>>) attributes {dimension_semantics = [#tpu.dimension_semantics<parallel>, #tpu.dimension_semantics<parallel>, #tpu.dimension_semantics<arbitrary>], iteration_bounds = array<i64: 2, 1, 1>, scalar_prefetch = 0 : i64, scratch_operands = 4 : i64, tpu.core_type = #tpu.core_type<tc>, window_params = [{transform_indices = @transform_0, window_bounds = array<i64: 1, 8, 32>}, {transform_indices = @transform_1, window_bounds = array<i64: 1, 8, 32>}, {pipeline_mode = #tpu.pipeline_mode<synchronous>, transform_indices = @transform_2, window_bounds = array<i64: 32, 128>}, {pipeline_mode = #tpu.pipeline_mode<synchronous>, transform_indices = @transform_3, window_bounds = array<i64: 32, 256>}, {pipeline_mode = #tpu.pipeline_mode<synchronous>, transform_indices = @transform_4, window_bounds = array<i64: 1, 128>}, {pipeline_mode = #tpu.pipeline_mode<synchronous>, transform_indices = @transform_5, window_bounds = array<i64: 1, 256>}, {transform_indices = @transform_6, window_bounds = array<i64: 1, 8, 8>}, {transform_indices = @transform_7, window_bounds = array<i64: 1, 8, 128>}]} {
    %c0_i32 = arith.constant 0 : i32
    %0 = arith.cmpi eq, %arg2, %c0_i32 : i32
    %1 = arith.extui %0 : i1 to i32
    %c0_i32_0 = arith.constant 0 : i32
    %2 = arith.cmpi ne, %1, %c0_i32_0 : i32
    scf.if %2 {
      %c0_33 = arith.constant 0 : index
      %c0_34 = arith.constant 0 : index
      %c0_35 = arith.constant 0 : index
      %51 = vector.load %arg3[%c0_33, %c0_34, %c0_35] : memref<1x8x32xbf16, #tpu.memory_space<vmem>>, vector<1x8x32xbf16>
      %52 = vector.shape_cast %51 : vector<1x8x32xbf16> to vector<8x32xbf16>
      %c0_36 = arith.constant 0 : index
      %c0_37 = arith.constant 0 : index
      %53 = vector.load %arg5[%c0_36, %c0_37] : memref<32x128xbf16, #tpu.memory_space<vmem>>, vector<32x128xbf16>
      %cst_38 = arith.constant dense<0.000000e+00> : vector<8x128xf32>
      %54 = tpu.matmul %52, %53, %cst_38 {dimension_numbers = #tpu.dot_dimension_numbers<[1], [0], [0], [1], [0, 0, 1, 1], [], []>} : vector<8x32xbf16>, vector<32x128xbf16>, vector<8x128xf32> -> vector<8x128xf32>
      %c0_39 = arith.constant 0 : index
      %c0_40 = arith.constant 0 : index
      %55 = vector.load %arg7[%c0_39, %c0_40] : memref<1x128xf32, #tpu.memory_space<vmem>>, vector<1x128xf32>
      %56 = vector.broadcast %55 : vector<1x128xf32> to vector<8x128xf32>
      %57 = arith.addf %54, %56 : vector<8x128xf32>
      %c0_41 = arith.constant 0 : index
      %c0_42 = arith.constant 0 : index
      %58 = vector.load %arg11[%c0_41, %c0_42] : memref<8x128xf32, #tpu.memory_space<vmem>>, vector<8x128xf32>
      tpu.vector_store %arg11[%c0_41, %c0_42], %57 {strides = array<i32>} : memref<8x128xf32, #tpu.memory_space<vmem>>, vector<8x128xf32>,
      %cst_43 = arith.constant 0xFF800000 : f32
      %59 = vector.broadcast %cst_43 : f32 to vector<8x1xf32>
      %c0_44 = arith.constant 0 : index
      %c0_45 = arith.constant 0 : index
      %60 = vector.load %arg12[%c0_44, %c0_45] : memref<8x1xf32, #tpu.memory_space<vmem>>, vector<8x1xf32>
      tpu.vector_store %arg12[%c0_44, %c0_45], %59 {strides = array<i32>} : memref<8x1xf32, #tpu.memory_space<vmem>>, vector<8x1xf32>,
      %cst_46 = arith.constant 0.000000e+00 : f32
      %61 = vector.broadcast %cst_46 : f32 to vector<8x1xf32>
      %c0_47 = arith.constant 0 : index
      %c0_48 = arith.constant 0 : index
      %62 = vector.load %arg13[%c0_47, %c0_48] : memref<8x1xf32, #tpu.memory_space<vmem>>, vector<8x1xf32>
      tpu.vector_store %arg13[%c0_47, %c0_48], %61 {strides = array<i32>} : memref<8x1xf32, #tpu.memory_space<vmem>>, vector<8x1xf32>,
      %cst_49 = arith.constant 0.000000e+00 : f32
      %63 = vector.broadcast %cst_49 : f32 to vector<8x128xf32>
      %c0_50 = arith.constant 0 : index
      %c0_51 = arith.constant 0 : index
      %64 = vector.load %arg14[%c0_50, %c0_51] : memref<8x128xf32, #tpu.memory_space<vmem>>, vector<8x128xf32>
      tpu.vector_store %arg14[%c0_50, %c0_51], %63 {strides = array<i32>} : memref<8x128xf32, #tpu.memory_space<vmem>>, vector<8x128xf32>,
    } else {
    }
    %c0 = arith.constant 0 : index
    %c0_1 = arith.constant 0 : index
    %c0_2 = arith.constant 0 : index
    %3 = vector.load %arg4[%c0, %c0_1, %c0_2] : memref<1x8x32xbf16, #tpu.memory_space<vmem>>, vector<1x8x32xbf16>
    %4 = vector.shape_cast %3 : vector<1x8x32xbf16> to vector<8x32xbf16>
    %c0_3 = arith.constant 0 : index
    %c0_4 = arith.constant 0 : index
    %5 = vector.load %arg6[%c0_3, %c0_4] : memref<32x256xbf16, #tpu.memory_space<vmem>>, vector<32x256xbf16>
    %cst = arith.constant dense<0.000000e+00> : vector<8x256xf32>
    %6 = tpu.matmul %4, %5, %cst {dimension_numbers = #tpu.dot_dimension_numbers<[1], [0], [0], [1], [0, 0, 1, 1], [], []>} : vector<8x32xbf16>, vector<32x256xbf16>, vector<8x256xf32> -> vector<8x256xf32>
    %c0_5 = arith.constant 0 : index
    %c0_6 = arith.constant 0 : index
    %7 = vector.load %arg8[%c0_5, %c0_6] : memref<1x256xf32, #tpu.memory_space<vmem>>, vector<1x256xf32>
    %8 = vector.broadcast %7 : vector<1x256xf32> to vector<8x256xf32>
    %9 = arith.addf %6, %8 : vector<8x256xf32>
    %10 = vector.extract_strided_slice %9 {offsets = [0, 0], sizes = [8, 128], strides = [1, 1]} : vector<8x256xf32> to vector<8x128xf32>
    %11 = arith.truncf %10 : vector<8x128xf32> to vector<8x128xbf16>
    %12 = vector.extract_strided_slice %9 {offsets = [0, 128], sizes = [8, 128], strides = [1, 1]} : vector<8x256xf32> to vector<8x128xf32>
    %13 = arith.truncf %12 : vector<8x128xf32> to vector<8x128xbf16>
    %c0_7 = arith.constant 0 : index
    %c0_8 = arith.constant 0 : index
    %14 = vector.load %arg11[%c0_7, %c0_8] : memref<8x128xf32, #tpu.memory_space<vmem>>, vector<8x128xf32>
    %15 = arith.truncf %14 : vector<8x128xf32> to vector<8x128xbf16>
    %cst_9 = arith.constant dense<0.000000e+00> : vector<8x8xf32>
    %16 = tpu.matmul %15, %11, %cst_9 {dimension_numbers = #tpu.dot_dimension_numbers<[1], [1], [0], [0], [0, 0, 1, 0], [], []>} : vector<8x128xbf16>, vector<8x128xbf16>, vector<8x8xf32> -> vector<8x8xf32>
    %cst_10 = arith.constant 0.176776692 : f32
    %17 = vector.broadcast %cst_10 : f32 to vector<8x8xf32>
    %18 = arith.mulf %16, %17 : vector<8x8xf32>
    %c0_11 = arith.constant 0 : index
    %c0_12 = arith.constant 0 : index
    %c0_13 = arith.constant 0 : index
    %19 = vector.load %arg9[%c0_11, %c0_12, %c0_13] : memref<1x8x8xi32, #tpu.memory_space<vmem>>, vector<1x8x8xi32>
    %20 = vector.shape_cast %19 : vector<1x8x8xi32> to vector<8x8xi32>
    %c0_i32_14 = arith.constant 0 : i32
    %21 = vector.broadcast %c0_i32_14 : i32 to vector<8x8xi32>
    %22 = arith.cmpi eq, %20, %21 : vector<8x8xi32>
    %cst_15 = arith.constant 9.99999997E-7 : f32
    %23 = vector.broadcast %cst_15 : f32 to vector<8x8xf32>
    %24 = arith.select %22, %23, %18 : vector<8x8xi1>, vector<8x8xf32>
    %c0_16 = arith.constant 0 : index
    %c0_17 = arith.constant 0 : index
    %25 = vector.load %arg12[%c0_16, %c0_17] : memref<8x1xf32, #tpu.memory_space<vmem>>, vector<8x1xf32>
    %cst_18 = arith.constant dense<0xFF800000> : vector<8xf32>
    %26 = vector.multi_reduction <maximumf>, %24, %cst_18 [1] : vector<8x8xf32> to vector<8xf32>
    %27 = vector.shape_cast %26 : vector<8xf32> to vector<8x1xf32>
    %28 = arith.maximumf %25, %27 : vector<8x1xf32>
    %29 = arith.subf %25, %28 : vector<8x1xf32>
    %30 = math.exp %29 : vector<8x1xf32>
    %31 = vector.broadcast %28 : vector<8x1xf32> to vector<8x8xf32>
    %32 = arith.subf %24, %31 : vector<8x8xf32>
    %33 = math.exp %32 : vector<8x8xf32>
    %c0_19 = arith.constant 0 : index
    %c0_20 = arith.constant 0 : index
    %34 = vector.load %arg13[%c0_19, %c0_20] : memref<8x1xf32, #tpu.memory_space<vmem>>, vector<8x1xf32>
    %35 = arith.mulf %30, %34 : vector<8x1xf32>
    %cst_21 = arith.constant dense<0.000000e+00> : vector<8xf32>
    %36 = vector.multi_reduction <add>, %33, %cst_21 [1] : vector<8x8xf32> to vector<8xf32>
    %37 = vector.shape_cast %36 : vector<8xf32> to vector<8x1xf32>
    %38 = arith.addf %35, %37 : vector<8x1xf32>
    %c0_22 = arith.constant 0 : index
    %c0_23 = arith.constant 0 : index
    %39 = vector.load %arg13[%c0_22, %c0_23] : memref<8x1xf32, #tpu.memory_space<vmem>>, vector<8x1xf32>
    tpu.vector_store %arg13[%c0_22, %c0_23], %38 {strides = array<i32>} : memref<8x1xf32, #tpu.memory_space<vmem>>, vector<8x1xf32>,
    %c0_24 = arith.constant 0 : index
    %c0_25 = arith.constant 0 : index
    %40 = vector.load %arg14[%c0_24, %c0_25] : memref<8x128xf32, #tpu.memory_space<vmem>>, vector<8x128xf32>
    %41 = vector.broadcast %30 : vector<8x1xf32> to vector<8x128xf32>
    %42 = arith.mulf %41, %40 : vector<8x128xf32>
    %43 = arith.truncf %33 : vector<8x8xf32> to vector<8x8xbf16>
    %cst_26 = arith.constant dense<0.000000e+00> : vector<8x128xf32>
    %44 = tpu.matmul %43, %13, %cst_26 {dimension_numbers = #tpu.dot_dimension_numbers<[1], [0], [0], [1], [0, 0, 1, 1], [], []>} : vector<8x8xbf16>, vector<8x128xbf16>, vector<8x128xf32> -> vector<8x128xf32>
    %45 = arith.addf %42, %44 : vector<8x128xf32>
    %c0_27 = arith.constant 0 : index
    %c0_28 = arith.constant 0 : index
    %46 = vector.load %arg14[%c0_27, %c0_28] : memref<8x128xf32, #tpu.memory_space<vmem>>, vector<8x128xf32>
    tpu.vector_store %arg14[%c0_27, %c0_28], %45 {strides = array<i32>} : memref<8x128xf32, #tpu.memory_space<vmem>>, vector<8x128xf32>,
    %c0_29 = arith.constant 0 : index
    %c0_30 = arith.constant 0 : index
    %47 = vector.load %arg12[%c0_29, %c0_30] : memref<8x1xf32, #tpu.memory_space<vmem>>, vector<8x1xf32>
    tpu.vector_store %arg12[%c0_29, %c0_30], %28 {strides = array<i32>} : memref<8x1xf32, #tpu.memory_space<vmem>>, vector<8x1xf32>,
    %c0_i32_31 = arith.constant 0 : i32
    %48 = arith.cmpi eq, %arg2, %c0_i32_31 : i32
    %49 = arith.extui %48 : i1 to i32
    %c0_i32_32 = arith.constant 0 : i32
    %50 = arith.cmpi ne, %49, %c0_i32_32 : i32
    scf.if %50 {
      %c0_33 = arith.constant 0 : index
      %c0_34 = arith.constant 0 : index
      %51 = vector.load %arg13[%c0_33, %c0_34] : memref<8x1xf32, #tpu.memory_space<vmem>>, vector<8x1xf32>
      %52 = tpu.reciprocal %51 {approx = true} : vector<8x1xf32> -> vector<8x1xf32>
      %53 = arith.mulf %51, %52 : vector<8x1xf32>
      %cst_35 = arith.constant 2.000000e+00 : f32
      %54 = vector.broadcast %cst_35 : f32 to vector<8x1xf32>
      %55 = arith.subf %54, %53 : vector<8x1xf32>
      %56 = arith.mulf %52, %55 : vector<8x1xf32>
      %c0_36 = arith.constant 0 : index
      %c0_37 = arith.constant 0 : index
      %57 = vector.load %arg14[%c0_36, %c0_37] : memref<8x128xf32, #tpu.memory_space<vmem>>, vector<8x128xf32>
      %58 = vector.broadcast %56 : vector<8x1xf32> to vector<8x128xf32>
      %59 = arith.mulf %57, %58 : vector<8x128xf32>
      %c0_38 = arith.constant 0 : index
      %c0_39 = arith.constant 0 : index
      %c0_40 = arith.constant 0 : index
      %60 = vector.load %arg10[%c0_38, %c0_39, %c0_40] : memref<1x8x128xf32, #tpu.memory_space<vmem>>, vector<1x8x128xf32>
      %61 = vector.shape_cast %60 : vector<1x8x128xf32> to vector<8x128xf32>
      %62 = vector.shape_cast %59 : vector<8x128xf32> to vector<1x8x128xf32>
      tpu.vector_store %arg10[%c0_38, %c0_39, %c0_40], %62 {strides = array<i32>} : memref<1x8x128xf32, #tpu.memory_space<vmem>>, vector<1x8x128xf32>,
    } else {
    }
    return
  }
  func.func @transform_0(%arg0: i32, %arg1: i32, %arg2: i32) -> (i32, i32, i32) {
    %c0_i32 = arith.constant 0 : i32
    %c0_i32_0 = arith.constant 0 : i32
    return %arg0, %arg1, %c0_i32 : i32, i32, i32
  }
  func.func @transform_1(%arg0: i32, %arg1: i32, %arg2: i32) -> (i32, i32, i32) {
    %c0_i32 = arith.constant 0 : i32
    %c0_i32_0 = arith.constant 0 : i32
    return %arg0, %arg2, %c0_i32 : i32, i32, i32
  }
  func.func @transform_2(%arg0: i32, %arg1: i32, %arg2: i32) -> (i32, i32) {
    %c0_i32 = arith.constant 0 : i32
    %c0_i32_0 = arith.constant 0 : i32
    %c0_i32_1 = arith.constant 0 : i32
    return %c0_i32, %c0_i32_0 : i32, i32
  }
  func.func @transform_3(%arg0: i32, %arg1: i32, %arg2: i32) -> (i32, i32) {
    %c0_i32 = arith.constant 0 : i32
    %c0_i32_0 = arith.constant 0 : i32
    %c0_i32_1 = arith.constant 0 : i32
    return %c0_i32, %c0_i32_0 : i32, i32
  }
  func.func @transform_4(%arg0: i32, %arg1: i32, %arg2: i32) -> (i32, i32) {
    %c0_i32 = arith.constant 0 : i32
    %c0_i32_0 = arith.constant 0 : i32
    %c0_i32_1 = arith.constant 0 : i32
    return %c0_i32, %c0_i32_0 : i32, i32
  }
  func.func @transform_5(%arg0: i32, %arg1: i32, %arg2: i32) -> (i32, i32) {
    %c0_i32 = arith.constant 0 : i32
    %c0_i32_0 = arith.constant 0 : i32
    %c0_i32_1 = arith.constant 0 : i32
    return %c0_i32, %c0_i32_0 : i32, i32
  }
  func.func @transform_6(%arg0: i32, %arg1: i32, %arg2: i32) -> (i32, i32, i32) {
    %c0_i32 = arith.constant 0 : i32
    return %arg0, %arg1, %arg2 : i32, i32, i32
  }
  func.func @transform_7(%arg0: i32, %arg1: i32, %arg2: i32) -> (i32, i32, i32) {
    %c0_i32 = arith.constant 0 : i32
    %c0_i32_0 = arith.constant 0 : i32
    return %arg0, %arg1, %c0_i32 : i32, i32, i32
  }
}

</mosaic_0001>

<llo_original>
// kernel: tpu_custom_call.1
$region0: #{tpu_custom_call.1}
  #allocation0 [shape = 'u32[]', space=smem, size = 0x4, offset = 0x4, fixed_abs, tag = 'smem constant byte address 0x4 - core index']
  #allocation1 [shape = 'u32[144,128]{1,0:T(1,128)}', space=vmem, size = 0x12000, scoped, tag = 'internal scratch']
  #allocation2 [shape = 'f32[8,128]{1,0:T(8,128)}', space=vmem, size = 0x1000, scoped, tag = 'scratch operand']
  #allocation3 [shape = 'f32[8,1]{1,0:T(8,128)}', space=vmem, size = 0x1000, scoped, tag = 'scratch operand']
  #allocation4 [shape = 'f32[8,1]{1,0:T(8,128)}', space=vmem, size = 0x1000, scoped, tag = 'scratch operand']
  #allocation5 [shape = 'f32[8,128]{1,0:T(8,128)}', space=vmem, size = 0x1000, scoped, tag = 'scratch operand']
  %s0 = inlined_call_operand.hbm [shape: bf16[2,8,32], index: 0, kind: input, shape index: {}]
  %s1 = inlined_call_operand.hbm [shape: bf16[2,8,32], index: 1, kind: input, shape index: {}]
  %s2 = inlined_call_operand.hbm [shape: bf16[32,128], index: 2, kind: input, shape index: {}]
  %s3 = inlined_call_operand.hbm [shape: bf16[32,256], index: 3, kind: input, shape index: {}]
  %s4 = inlined_call_operand.vmem [shape: f32[1,128], index: 4, kind: input, shape index: {}]
  %s5 = inlined_call_operand.vmem [shape: f32[1,256], index: 5, kind: input, shape index: {}]
  %s6 = inlined_call_operand.vmem [shape: s32[2,8,8], index: 6, kind: input, shape index: {}]
  %s7 = inlined_call_operand.hbm [shape: f32[2,8,128], index: 7, kind: output, shape index: {}]
  %s8 = sld [smem:[#allocation0]]
  $region85: #{tpu_custom_call.1} parent=0
    _
  %s10 = ssub.s32 1, %s8
  %s11 = scalar_select 0, %s10, %s8
  $region1: #{tpu_custom_call.1} parent=0
    #allocation6 [shape = 'u8[4096]{0}', space=vmem, size = 0x1000, scoped, tag = 'input window, operand 0']
    #allocation7 [shape = 's32[2]{0}', space=sflag, size = 0x8, scoped, tag = 'scoped memory for tpu_custom_call.1']
    #allocation8 [shape = 's32[2]{0}', space=sflag, size = 0x8, scoped, tag = 'scoped memory for tpu_custom_call.1']
    #allocation9 [shape = 'u8[4096]{0}', space=vmem, size = 0x1000, scoped, tag = 'input window, operand 1']
    #allocation10 [shape = 's32[2]{0}', space=sflag, size = 0x8, scoped, tag = 'scoped memory for tpu_custom_call.1']
    #allocation11 [shape = 'u8[8192]{0}', space=vmem, size = 0x2000, scoped, tag = 'input window, operand 2, single buffered']
    #allocation12 [shape = 'u8[16384]{0}', space=vmem, size = 0x4000, scoped, tag = 'input window, operand 3, single buffered']
    #allocation13 [shape = 's32[1]{0}', space=sflag, size = 0x4, scoped, tag = 'scoped memory for tpu_custom_call.1']
    #allocation14 [shape = 'u8[8192]{0}', space=vmem, size = 0x2000, scoped, tag = 'output window, operand 0']
    %12 = vsyncpa [#allocation7], 0
    %s13 = scalar_lea.sflag [#allocation7], 1
    %14 = vsyncpa %s13, 0
    %15 = vsyncpa [#allocation10], 0
    %s16 = scalar_lea.sflag [#allocation10], 1
    %17 = vsyncpa %s16, 0
    %18 = vsyncpa [#allocation13], 0
    %19 = vsyncpa [#allocation8], 0
    %s20 = scalar_lea.sflag [#allocation8], 1
    %21 = vsyncpa %s20, 0
    loop: start=0, step=1, limit=4
    $region2: #{tpu_custom_call.1} parent=1 // loop_pre_header
      _
    $region3: #{tpu_custom_call.1} parent=1 // loop_header
      %s23 = sphi 0, %s27
      %p24 = scmp.ge.s32.totalorder %s23, 4
      %s30 = sphi 0, %s49
      %s31 = sphi 0, %s45
      %s32 = sphi 0, %s41
      %s33 = sphi 0, %s30
      %s34 = sphi 0, %s31
      %s35 = sphi 0, %s32
      %s36 = sphi 0, %s33
      %s37 = sphi 0, %s34
      %s38 = sphi 0, %s35
      %s54 = sphi 0, %s56
      %s57 = sphi 0, %s54
      %s58 = sphi 0, %s57
      %s74 = sphi 0, %s58
      %s82 = sphi 0, %s84
      %s85 = sphi 0, %s82
      %s86 = sphi 0, %s85
      %s102 = sphi 0, %s86
      %s106 = sphi 0, %s106
      %s108 = sphi 0, %s106
      %s109 = sphi 0, %s108
      %s123 = sphi 0, %s109
      %s127 = sphi 0, %s127
      %s129 = sphi 0, %s127
      %s130 = sphi 0, %s129
      %s144 = sphi 0, %s130
      %s148 = sphi 0, %s148
      %s150 = sphi 0, %s148
      %s151 = sphi 0, %s150
      %s165 = sphi 0, %s151
      %s169 = sphi 0, %s169
      %s171 = sphi 0, %s169
      %s172 = sphi 0, %s171
      %s186 = sphi 0, %s172
      %s196 = sphi 0, %s198
      %s199 = sphi 0, %s196
      %s200 = sphi 0, %s199
      %s216 = sphi 0, %s200
      %s224 = sphi 0, %s226
      %s227 = sphi 0, %s224
      %s228 = sphi 0, %s227
      %s244 = sphi 0, %s228
    $region4: #{tpu_custom_call.1} parent=1 // loop_header_branch
      %26 = sbr.rel (%p24) target = $region8
    $region5: #{tpu_custom_call.1} parent=1 // loop_body
      %s28 = ssub.s32 %s23, 1
      %s29 = ssub.s32 %s23, 2
      %s39 = sadd.s32 1, %s32
      %p40 = scmp.ge.s32.totalorder %s39, 1
      %s41 = scalar_select %p40, 0, %s39
      %s42 = sadd.s32 1, %s31
      %s43 = scalar_select %p40, %s42, %s31
      %p44 = scmp.ge.s32.totalorder %s43, 1
      %s45 = scalar_select %p44, 0, %s43
      %s46 = sadd.s32 1, %s30
      %s47 = scalar_select %p44, %s46, %s30
      %p48 = scmp.ge.s32.totalorder %s47, 2
      %s49 = scalar_select %p48, 0, %s47
      %s50 = ssub.s32 %s30, %s49
      %s51 = ssub.s32 %s31, %s45
      %s52 = sor.u32 %s50, %s51
      %p53 = scmp.eq.s32.totalorder %s52, 0
      %s55 = sadd.s32 %s54, 1
      %s56 = scalar_select %p53, %s54, %s55
      %p59 = pneg %p53
      %p60 = scmp.eq.s32.totalorder %s23, 1
      %p61 = por %p59, %p60
      %p62 = scmp.ne.s32.totalorder %s54, %s57
      %p63 = scmp.eq.s32.totalorder %s23, 0
      %p64 = por %p62, %p63
      %p65 = scmp.ne.s32.totalorder %s54, %s57
      %p66 = scmp.eq.s32.totalorder %s28, 1
      %p67 = por %p65, %p66
      %p68 = scmp.ne.s32.totalorder %s57, %s58
      %p69 = scmp.eq.s32.totalorder %s28, 0
      %p70 = por %p68, %p69
      %p71 = scmp.ne.s32.totalorder %s57, %s58
      %p72 = scmp.eq.s32.totalorder %s29, 1
      %p73 = por %p71, %p72
      %p75 = scmp.ne.s32.totalorder %s58, %s74
      %p76 = scmp.eq.s32.totalorder %s29, 0
      %p77 = por %p75, %p76
      %s78 = ssub.s32 %s30, %s49
      %s79 = ssub.s32 %s32, %s41
      %s80 = sor.u32 %s78, %s79
      %p81 = scmp.eq.s32.totalorder %s80, 0
      %s83 = sadd.s32 %s82, 1
      %s84 = scalar_select %p81, %s82, %s83
      %p87 = pneg %p81
      %p88 = scmp.eq.s32.totalorder %s23, 1
      %p89 = por %p87, %p88
      %p90 = scmp.ne.s32.totalorder %s82, %s85
      %p91 = scmp.eq.s32.totalorder %s23, 0
      %p92 = por %p90, %p91
      %p93 = scmp.ne.s32.totalorder %s82, %s85
      %p94 = scmp.eq.s32.totalorder %s28, 1
      %p95 = por %p93, %p94
      %p96 = scmp.ne.s32.totalorder %s85, %s86
      %p97 = scmp.eq.s32.totalorder %s28, 0
      %p98 = por %p96, %p97
      %p99 = scmp.ne.s32.totalorder %s85, %s86
      %p100 = scmp.eq.s32.totalorder %s29, 1
      %p101 = por %p99, %p100
      %p103 = scmp.ne.s32.totalorder %s86, %s102
      %p104 = scmp.eq.s32.totalorder %s29, 0
      %p105 = por %p103, %p104
      %s107 = sadd.s32 %s106, 1
      %p110 = scmp.eq.s32.totalorder %s23, 1
      %p111 = scmp.ne.s32.totalorder %s106, %s108
      %p112 = scmp.eq.s32.totalorder %s23, 0
      %p113 = por %p111, %p112
      %p114 = scmp.ne.s32.totalorder %s106, %s108
      %p115 = scmp.eq.s32.totalorder %s28, 1
      %p116 = por %p114, %p115
      %p117 = scmp.ne.s32.totalorder %s108, %s109
      %p118 = scmp.eq.s32.totalorder %s28, 0
      %p119 = por %p117, %p118
      %p120 = scmp.ne.s32.totalorder %s108, %s109
      %p121 = scmp.eq.s32.totalorder %s29, 1
      %p122 = por %p120, %p121
      %p124 = scmp.ne.s32.totalorder %s109, %s123
      %p125 = scmp.eq.s32.totalorder %s29, 0
      %p126 = por %p124, %p125
      %s128 = sadd.s32 %s127, 1
      %p131 = scmp.eq.s32.totalorder %s23, 1
      %p132 = scmp.ne.s32.totalorder %s127, %s129
      %p133 = scmp.eq.s32.totalorder %s23, 0
      %p134 = por %p132, %p133
      %p135 = scmp.ne.s32.totalorder %s127, %s129
      %p136 = scmp.eq.s32.totalorder %s28, 1
      %p137 = por %p135, %p136
      %p138 = scmp.ne.s32.totalorder %s129, %s130
      %p139 = scmp.eq.s32.totalorder %s28, 0
      %p140 = por %p138, %p139
      %p141 = scmp.ne.s32.totalorder %s129, %s130
      %p142 = scmp.eq.s32.totalorder %s29, 1
      %p143 = por %p141, %p142
      %p145 = scmp.ne.s32.totalorder %s130, %s144
      %p146 = scmp.eq.s32.totalorder %s29, 0
      %p147 = por %p145, %p146
      %s149 = sadd.s32 %s148, 1
      %p152 = scmp.eq.s32.totalorder %s23, 1
      %p153 = scmp.ne.s32.totalorder %s148, %s150
      %p154 = scmp.eq.s32.totalorder %s23, 0
      %p155 = por %p153, %p154
      %p156 = scmp.ne.s32.totalorder %s148, %s150
      %p157 = scmp.eq.s32.totalorder %s28, 1
      %p158 = por %p156, %p157
      %p159 = scmp.ne.s32.totalorder %s150, %s151
      %p160 = scmp.eq.s32.totalorder %s28, 0
      %p161 = por %p159, %p160
      %p162 = scmp.ne.s32.totalorder %s150, %s151
      %p163 = scmp.eq.s32.totalorder %s29, 1
      %p164 = por %p162, %p163
      %p166 = scmp.ne.s32.totalorder %s151, %s165
      %p167 = scmp.eq.s32.totalorder %s29, 0
      %p168 = por %p166, %p167
      %s170 = sadd.s32 %s169, 1
      %p173 = scmp.eq.s32.totalorder %s23, 1
      %p174 = scmp.ne.s32.totalorder %s169, %s171
      %p175 = scmp.eq.s32.totalorder %s23, 0
      %p176 = por %p174, %p175
      %p177 = scmp.ne.s32.totalorder %s169, %s171
      %p178 = scmp.eq.s32.totalorder %s28, 1
      %p179 = por %p177, %p178
      %p180 = scmp.ne.s32.totalorder %s171, %s172
      %p181 = scmp.eq.s32.totalorder %s28, 0
      %p182 = por %p180, %p181
      %p183 = scmp.ne.s32.totalorder %s171, %s172
      %p184 = scmp.eq.s32.totalorder %s29, 1
      %p185 = por %p183, %p184
      %p187 = scmp.ne.s32.totalorder %s172, %s186
      %p188 = scmp.eq.s32.totalorder %s29, 0
      %p189 = por %p187, %p188
      %s190 = ssub.s32 %s30, %s49
      %s191 = ssub.s32 %s31, %s45
      %s192 = sor.u32 %s190, %s191
      %s193 = ssub.s32 %s32, %s41
      %s194 = sor.u32 %s192, %s193
      %p195 = scmp.eq.s32.totalorder %s194, 0
      %s197 = sadd.s32 %s196, 1
      %s198 = scalar_select %p195, %s196, %s197
      %p201 = pneg %p195
      %p202 = scmp.eq.s32.totalorder %s23, 1
      %p203 = por %p201, %p202
      %p204 = scmp.ne.s32.totalorder %s196, %s199
      %p205 = scmp.eq.s32.totalorder %s23, 0
      %p206 = por %p204, %p205
      %p207 = scmp.ne.s32.totalorder %s196, %s199
      %p208 = scmp.eq.s32.totalorder %s28, 1
      %p209 = por %p207, %p208
      %p210 = scmp.ne.s32.totalorder %s199, %s200
      %p211 = scmp.eq.s32.totalorder %s28, 0
      %p212 = por %p210, %p211
      %p213 = scmp.ne.s32.totalorder %s199, %s200
      %p214 = scmp.eq.s32.totalorder %s29, 1
      %p215 = por %p213, %p214
      %p217 = scmp.ne.s32.totalorder %s200, %s216
      %p218 = scmp.eq.s32.totalorder %s29, 0
      %p219 = por %p217, %p218
      %s220 = ssub.s32 %s30, %s49
      %s221 = ssub.s32 %s31, %s45
      %s222 = sor.u32 %s220, %s221
      %p223 = scmp.eq.s32.totalorder %s222, 0
      %s225 = sadd.s32 %s224, 1
      %s226 = scalar_select %p223, %s224, %s225
      %p229 = pneg %p223
      %p230 = scmp.eq.s32.totalorder %s23, 1
      %p231 = por %p229, %p230
      %p232 = scmp.ne.s32.totalorder %s224, %s227
      %p233 = scmp.eq.s32.totalorder %s23, 0
      %p234 = por %p232, %p233
      %p235 = scmp.ne.s32.totalorder %s224, %s227
      %p236 = scmp.eq.s32.totalorder %s28, 1
      %p237 = por %p235, %p236
      %p238 = scmp.ne.s32.totalorder %s227, %s228
      %p239 = scmp.eq.s32.totalorder %s28, 0
      %p240 = por %p238, %p239
      %p241 = scmp.ne.s32.totalorder %s227, %s228
      %p242 = scmp.eq.s32.totalorder %s29, 1
      %p243 = por %p241, %p242
      %p245 = scmp.ne.s32.totalorder %s228, %s244
      %p246 = scmp.eq.s32.totalorder %s29, 0
      %p247 = por %p245, %p246
      %p248 = scmp.le.s32.totalorder 1, %s23
      %p249 = scmp.lt.s32.totalorder %s23, 3
      %p250 = pnand %p248, %p249
      %p251 = pneg %p250
      // Predicated region
      $region9: #{tpu_custom_call.1} parent=5 // pred_check
        _
      $region10: #{tpu_custom_call.1} parent=5 // pred_check_branch
        %253 = sbr.rel (%p250) target = $region12
      $region11: #{tpu_custom_call.1} parent=5 // pred_region
        %s254 = ssub.s32 %s23, 1
        // Predicated region
        $region13: #{tpu_custom_call.1} parent=11 // pred_check
          %p255 = pneg %p119
        $region14: #{tpu_custom_call.1} parent=11 // pred_check_branch
          %257 = sbr.rel (%p255) target = $region16
        $region15: #{tpu_custom_call.1} parent=11 // pred_region
          %s259 = ssub.s32 256, 256
          %260 = vsyncadd [#allocation10], %s259
          %s261 = sshll.u32 [#allocation11], 4
          %s262 = int_to_ptr.vmem [resolvable:$true] %s261
          %267 = dma.hbm_to_vmem [thread:$0]  %s2, 256, %s262, [#allocation10], 64, 64, 4
        $region16: #{tpu_custom_call.1} parent=11 // pred_fallthru
          _
        // Predicated region
        $region17: #{tpu_custom_call.1} parent=11 // pred_check
          %p268 = pneg %p140
        $region18: #{tpu_custom_call.1} parent=11 // pred_check_branch
          %270 = sbr.rel (%p268) target = $region20
        $region19: #{tpu_custom_call.1} parent=11 // pred_region
          %s272 = ssub.s32 512, 512
          %273 = vsyncadd [#allocation13], %s272
          %s274 = sshll.u32 [#allocation12], 4
          %s275 = int_to_ptr.vmem [resolvable:$true] %s274
          %280 = dma.hbm_to_vmem [thread:$0]  %s3, 512, %s275, [#allocation13], 128, 128, 8
        $region20: #{tpu_custom_call.1} parent=11 // pred_fallthru
          _
        // Predicated region
        $region21: #{tpu_custom_call.1} parent=11 // pred_check
          %p281 = pneg %p161
        $region22: #{tpu_custom_call.1} parent=11 // pred_check_branch
          %283 = sbr.rel (%p281) target = $region24
        $region23: #{tpu_custom_call.1} parent=11 // pred_region
          _
        $region24: #{tpu_custom_call.1} parent=11 // pred_fallthru
          _
        // Predicated region
        $region25: #{tpu_custom_call.1} parent=11 // pred_check
          %p284 = pneg %p182
        $region26: #{tpu_custom_call.1} parent=11 // pred_check_branch
          %286 = sbr.rel (%p284) target = $region28
        $region27: #{tpu_custom_call.1} parent=11 // pred_region
          _
        $region28: #{tpu_custom_call.1} parent=11 // pred_fallthru
          _
      $region12: #{tpu_custom_call.1} parent=5 // pred_fallthru
        _
      %p287 = scmp.lt.s32.totalorder %s23, 2
      // Predicated region
      $region29: #{tpu_custom_call.1} parent=5 // pred_check
        %p288 = pneg %p287
      $region30: #{tpu_custom_call.1} parent=5 // pred_check_branch
        %290 = sbr.rel (%p288) target = $region32
      $region31: #{tpu_custom_call.1} parent=5 // pred_region
        // Predicated region
        $region33: #{tpu_custom_call.1} parent=31 // pred_check
          %p291 = pneg %p64
        $region34: #{tpu_custom_call.1} parent=31 // pred_check_branch
          %293 = sbr.rel (%p291) target = $region36
        $region35: #{tpu_custom_call.1} parent=31 // pred_region
          %s294 = sand.u32 %s54, 1
          %s295 = scalar_lea.sflag [#allocation7], %s294
          %s296 = sand.u32 %s54, 1
          %s297 = smul.addr %s296, 4
          %s298 = scalar_lea.vmem [#allocation6], %s297
          %s300 = ssub.s32 64, 64
          %301 = vsyncadd %s295, %s300
          %s302 = sadd.s32 %s31, %s30
          %s303 = smul.addr %s302, 64
          %s304 = scalar_lea.hbm %s0, %s303
          %s306 = sshll.u32 %s298, 4
          %s307 = int_to_ptr.vmem [resolvable:$true] %s306
          %309 = dma.hbm_to_vmem [thread:$0]  %s304, 64, %s307, %s295
        $region36: #{tpu_custom_call.1} parent=31 // pred_fallthru
          _
        // Predicated region
        $region37: #{tpu_custom_call.1} parent=31 // pred_check
          %p310 = pneg %p92
        $region38: #{tpu_custom_call.1} parent=31 // pred_check_branch
          %312 = sbr.rel (%p310) target = $region40
        $region39: #{tpu_custom_call.1} parent=31 // pred_region
          %s313 = sand.u32 %s23, 1
          %s314 = scalar_lea.sflag [#allocation10], %s313
          %s315 = sand.u32 %s82, 1
          %s316 = smul.addr %s315, 4
          %s317 = scalar_lea.vmem [#allocation9], %s316
          %s319 = ssub.s32 64, 64
          %320 = vsyncadd %s314, %s319
          %s321 = sadd.s32 %s32, %s30
          %s322 = smul.addr %s321, 64
          %s323 = scalar_lea.hbm %s1, %s322
          %s325 = sshll.u32 %s317, 4
          %s326 = int_to_ptr.vmem [resolvable:$true] %s325
          %328 = dma.hbm_to_vmem [thread:$0]  %s323, 64, %s326, %s314
        $region40: #{tpu_custom_call.1} parent=31 // pred_fallthru
          _
        // Predicated region
        $region41: #{tpu_custom_call.1} parent=31 // pred_check
          %p329 = pneg %p206
        $region42: #{tpu_custom_call.1} parent=31 // pred_check_branch
          %331 = sbr.rel (%p329) target = $region44
        $region43: #{tpu_custom_call.1} parent=31 // pred_region
          %p332 = scmp.lt.s32.totalorder %s30, 1
          %s333 = scalar_select %p332, %s30, 1
          %p334 = scmp.lt.s32.totalorder %s31, 0
          %s335 = scalar_select %p334, %s31, 0
          %p336 = scmp.lt.s32.totalorder %s32, 0
          %s337 = scalar_select %p336, %s32, 0
          %s338 = sadd.s32 %s337, %s335
          %s339 = sadd.s32 %s338, %s333
          %s340 = smul.addr %s339, 8
          %s341 = scalar_lea.vmem %s6, %s340
        $region44: #{tpu_custom_call.1} parent=31 // pred_fallthru
          _
      $region32: #{tpu_custom_call.1} parent=5 // pred_fallthru
        _
      %p342 = scmp.le.s32.totalorder 1, %s23
      %p343 = scmp.lt.s32.totalorder %s23, 3
      %p344 = pnand %p342, %p343
      %p345 = pneg %p344
      // Predicated region
      $region45: #{tpu_custom_call.1} parent=5 // pred_check
        _
      $region46: #{tpu_custom_call.1} parent=5 // pred_check_branch
        %347 = sbr.rel (%p344) target = $region48
      $region47: #{tpu_custom_call.1} parent=5 // pred_region
        %s348 = ssub.s32 %s23, 1
        %s349 = sand.u32 %s57, 1
        %s350 = scalar_lea.sflag [#allocation7], %s349
        %s351 = sand.u32 %s57, 1
        %s352 = smul.addr %s351, 4
        %s353 = scalar_lea.vmem [#allocation6], %s352
        // Predicated region
        $region49: #{tpu_custom_call.1} parent=47 // pred_check
          %p354 = pneg %p70
        $region50: #{tpu_custom_call.1} parent=47 // pred_check_branch
          %356 = sbr.rel (%p354) target = $region52
        $region51: #{tpu_custom_call.1} parent=47 // pred_region
          %357 = dma.done %s350, 64
        $region52: #{tpu_custom_call.1} parent=47 // pred_fallthru
          _
        %s358 = sand.u32 %s28, 1
        %s359 = scalar_lea.sflag [#allocation10], %s358
        %s360 = sand.u32 %s85, 1
        %s361 = smul.addr %s360, 4
        %s362 = scalar_lea.vmem [#allocation9], %s361
        // Predicated region
        $region53: #{tpu_custom_call.1} parent=47 // pred_check
          %p363 = pneg %p98
        $region54: #{tpu_custom_call.1} parent=47 // pred_check_branch
          %365 = sbr.rel (%p363) target = $region56
        $region55: #{tpu_custom_call.1} parent=47 // pred_region
          %366 = dma.done %s359, 64
        $region56: #{tpu_custom_call.1} parent=47 // pred_fallthru
          _
        // Predicated region
        $region57: #{tpu_custom_call.1} parent=47 // pred_check
          %p367 = pneg %p119
        $region58: #{tpu_custom_call.1} parent=47 // pred_check_branch
          %369 = sbr.rel (%p367) target = $region60
        $region59: #{tpu_custom_call.1} parent=47 // pred_region
          %370 = dma.done [#allocation10], 256
        $region60: #{tpu_custom_call.1} parent=47 // pred_fallthru
          _
        // Predicated region
        $region61: #{tpu_custom_call.1} parent=47 // pred_check
          %p371 = pneg %p140
        $region62: #{tpu_custom_call.1} parent=47 // pred_check_branch
          %373 = sbr.rel (%p371) target = $region64
        $region63: #{tpu_custom_call.1} parent=47 // pred_region
          %374 = dma.done [#allocation13], 512
        $region64: #{tpu_custom_call.1} parent=47 // pred_fallthru
          _
        %s375 = sand.u32 %s57, 1
        %s376 = scalar_lea.sflag [#allocation7], %s375
        %s377 = sand.u32 %s57, 1
        %s378 = smul.addr %s377, 4
        %s379 = scalar_lea.vmem [#allocation6], %s378
        %p380 = pneg %p70
        %p381 = pneg %p67
        %s382 = sand.u32 %s28, 1
        %s383 = scalar_lea.sflag [#allocation10], %s382
        %s384 = sand.u32 %s85, 1
        %s385 = smul.addr %s384, 4
        %s386 = scalar_lea.vmem [#allocation9], %s385
        %p387 = pneg %p98
        %p388 = pneg %p95
        %p389 = pneg %p119
        %p390 = pneg %p116
        %p391 = pneg %p140
        %p392 = pneg %p137
        %p393 = pneg %p161
        %p394 = pneg %p158
        %p395 = pneg %p182
        %p396 = pneg %p179
        %p397 = scmp.lt.s32.totalorder %s33, 1
        %s398 = scalar_select %p397, %s33, 1
        %p399 = scmp.lt.s32.totalorder %s34, 0
        %s400 = scalar_select %p399, %s34, 0
        %p401 = scmp.lt.s32.totalorder %s35, 0
        %s402 = scalar_select %p401, %s35, 0
        %s403 = sadd.s32 %s402, %s400
        %s404 = sadd.s32 %s403, %s398
        %s405 = smul.addr %s404, 8
        %s406 = scalar_lea.vmem %s6, %s405
        %p407 = pneg %p212
        %p408 = pneg %p209
        %p409 = pneg %p240
        %p410 = pneg %p237
        %s411 = sand.u32 %s227, 1
        %s412 = scalar_lea.sflag [#allocation8], %s411
        %s413 = sand.u32 %s227, 1
        %s414 = smul.addr %s413, 8
        %s415 = scalar_lea.vmem [#allocation14], %s414
        %p416 = scmp.lt.s32.totalorder %s33, 1
        %s417 = scalar_select %p416, %s33, 1
        %p418 = scmp.lt.s32.totalorder %s34, 0
        %s419 = scalar_select %p418, %s34, 0
        %p420 = scmp.lt.s32.totalorder %s35, 0
        %s421 = scalar_select %p420, %s35, 0
        %s422 = sadd.s32 %s421, %s419
        %s423 = sadd.s32 %s422, %s417
        %s424 = smul.addr %s423, 8
        %s425 = scalar_lea.vmem %s6, %s424
        %p427 = scmp.eq.s32.totalorder %s35, 0
        // Predicated region
        $region65: #{tpu_custom_call.1} parent=47 // pred_check
          %p428 = pneg %p427
        $region66: #{tpu_custom_call.1} parent=47 // pred_check_branch
          %430 = sbr.rel (%p428) target = $region68
        $region67: #{tpu_custom_call.1} parent=47 // pred_region
          %v431 = vld [vmem:[%s353] sm:$0xf]
          %v432 = vld [vmem:[#allocation11] sm:$0xf]
          %v433 = vld [vmem:[#allocation11 + $0x4] sm:$0xf]
          %v434 = vld [vmem:[#allocation11 + $0x8] sm:$0xf]
          %v435 = vld [vmem:[#allocation11 + $0xc] sm:$0xf]
          %v436 = vld [vmem:[%s4] sm:$0x1]
          %v438 = vlaneseq
          %v439 = vshrl.u32 %v438, 7
          %v440 = vsub.s32 0, %v439
          %v441 = vrot.slane %v436, %v440
          %v447 = vunpack.c.l.b16 %v432
          %v448 = vunpack.c.l.b16 %v433
          %v449 = vunpack.c.l.b16 %v434
          %v450 = vunpack.c.l.b16 %v435
          %v451 = vpack.c.b16 %v448, %v447
          %v452 = vpack.c.b16 %v450, %v449
          %vm455 = vcmask 261120
          %v457 = vsel %vm455, %v431, 0
          %459 = vmatprep.subr.bf16.mxu0 0
          %460 = vmatpush1.bf16.msra.mxu0 %v451
          %461 = vmatprep.subr.bf16.mxu0 0
          %462 = vmatpush1.bf16.msra.mxu0 %v452
          %463 = vmatprep.subr.bf16.mxu0 0
          %464 = vmatpush1.bf16.msra.mxu0 0
          %465 = vmatprep.subr.bf16.mxu0 0
          %466 = vmatpush1.bf16.msra.mxu0 0
          %467 = vmatprep.subr.bf16.mxu0 0
          %468 = vmatpush1.bf16.msra.mxu0 0
          %469 = vmatprep.subr.bf16.mxu0 0
          %470 = vmatpush1.bf16.msra.mxu0 0
          %471 = vmatprep.subr.bf16.mxu0 0
          %472 = vmatpush1.bf16.msra.mxu0 0
          %473 = vmatprep.subr.bf16.mxu0 0
          %474 = vmatpush1.bf16.msra.mxu0 0
          %475 = vmatprep.subr.bf16.mxu0 0
          %476 = vmatpush1.bf16.msra.mxu0 0
          %477 = vmatprep.subr.bf16.mxu0 0
          %478 = vmatpush1.bf16.msra.mxu0 0
          %479 = vmatprep.subr.bf16.mxu0 0
          %480 = vmatpush1.bf16.msra.mxu0 0
          %481 = vmatprep.subr.bf16.mxu0 0
          %482 = vmatpush1.bf16.msra.mxu0 0
          %483 = vmatprep.subr.bf16.mxu0 0
          %484 = vmatpush1.bf16.msra.mxu0 0
          %485 = vmatprep.subr.bf16.mxu0 0
          %486 = vmatpush1.bf16.msra.mxu0 0
          %487 = vmatprep.subr.bf16.mxu0 0
          %488 = vmatpush1.bf16.msra.mxu0 0
          %489 = vmatprep.subr.bf16.mxu0 0
          %490 = vmatpush1.bf16.msra.mxu0 0
          %491 = vmatprep.mubr.bf16.mxu0 0
          %492 = vmatmul.mubr.bf16.gmra.mrb[0].mxu0 %v457
          %v493 = vpop.f32.mrb[0].mxu0
          %v494 = vadd.f32 %v441, %v493
          %v495 = vpop.f32.mrb[0].mxu0
          %v496 = vpop.f32.mrb[0].mxu0
          %v497 = vpop.f32.mrb[0].mxu0
          %498 = vdwg.mxu0
          %499 = vst [vmem:[#allocation2] sm:$0xff] %v494
          %vm500 = vcmask 7168
          %501 = vst.msk [vmem:[#allocation3] sm:$0xff] %vm500, -inf
          %502 = vst.msk [vmem:[#allocation4] sm:$0xff] %vm500, 0.0
          %503 = vst [vmem:[#allocation5] sm:$0xff] 0.0
        $region68: #{tpu_custom_call.1} parent=47 // pred_fallthru
          _
        %v504 = vld [vmem:[%s362] sm:$0xf]
        %v505 = vld [vmem:[#allocation12] sm:$0xff]
        %v506 = vld [vmem:[#allocation12 + $0x8] sm:$0xff]
        %v507 = vld [vmem:[#allocation12 + $0x10] sm:$0xff]
        %v508 = vld [vmem:[#allocation12 + $0x18] sm:$0xff]
        %v509 = vld [vmem:[%s5] sm:$0x3]
        %v511 = vlaneseq
        %v512 = vshrl.u32 %v511, 7
        %v513 = vsub.s32 0, %v512
        %v514 = vrot.slane %v509, %v513
        %v515 = vlaneseq
        %v516 = vshrl.u32 %v515, 7
        %v517 = vsub.s32 1, %v516
        %v518 = vrot.slane %v509, %v517
        %v525 = vunpack.c.l.b16 %v505
        %v526 = vunpack.c.h.b16 %v505
        %v527 = vunpack.c.l.b16 %v506
        %v528 = vunpack.c.h.b16 %v506
        %v529 = vunpack.c.l.b16 %v507
        %v530 = vunpack.c.h.b16 %v507
        %v531 = vunpack.c.l.b16 %v508
        %v532 = vunpack.c.h.b16 %v508
        %v533 = vpack.c.b16 %v527, %v525
        %v534 = vpack.c.b16 %v528, %v526
        %v535 = vpack.c.b16 %v531, %v529
        %v536 = vpack.c.b16 %v532, %v530
        %vm541 = vcmask 261120
        %v543 = vsel %vm541, %v504, 0
        %545 = vmatprep.subr.bf16.mxu0 %v534
        %546 = vmatpush1.bf16.msra.mxu0 %v533
        %547 = vmatprep.subr.bf16.mxu0 %v536
        %548 = vmatpush1.bf16.msra.mxu0 %v535
        %549 = vmatprep.subr.bf16.mxu0 0
        %550 = vmatpush1.bf16.msra.mxu0 0
        %551 = vmatprep.subr.bf16.mxu0 0
        %552 = vmatpush1.bf16.msra.mxu0 0
        %553 = vmatprep.subr.bf16.mxu0 0
        %554 = vmatpush1.bf16.msra.mxu0 0
        %555 = vmatprep.subr.bf16.mxu0 0
        %556 = vmatpush1.bf16.msra.mxu0 0
        %557 = vmatprep.subr.bf16.mxu0 0
        %558 = vmatpush1.bf16.msra.mxu0 0
        %559 = vmatprep.subr.bf16.mxu0 0
        %560 = vmatpush1.bf16.msra.mxu0 0
        %561 = vmatprep.subr.bf16.mxu0 0
        %562 = vmatpush1.bf16.msra.mxu0 0
        %563 = vmatprep.subr.bf16.mxu0 0
        %564 = vmatpush1.bf16.msra.mxu0 0
        %565 = vmatprep.subr.bf16.mxu0 0
        %566 = vmatpush1.bf16.msra.mxu0 0
        %567 = vmatprep.subr.bf16.mxu0 0
        %568 = vmatpush1.bf16.msra.mxu0 0
        %569 = vmatprep.subr.bf16.mxu0 0
        %570 = vmatpush1.bf16.msra.mxu0 0
        %571 = vmatprep.subr.bf16.mxu0 0
        %572 = vmatpush1.bf16.msra.mxu0 0
        %573 = vmatprep.subr.bf16.mxu0 0
        %574 = vmatpush1.bf16.msra.mxu0 0
        %575 = vmatprep.subr.bf16.mxu0 0
        %576 = vmatpush1.bf16.msra.mxu0 0
        %577 = vmatprep.mubr.bf16.mxu0 0
        %578 = vmatmul.mubr.bf16.gmra.mrb[0].mxu0 %v543
        %v579 = vpop.f32.mrb[0].mxu0
        %v580 = vadd.f32 %v514, %v579
        %v581 = vpop.f32.mrb[0].mxu0
        %v582 = vadd.f32 %v518, %v581
        %v583 = vpop.f32.mrb[0].mxu0
        %v584 = vpop.f32.mrb[0].mxu0
        %585 = vdwg.mxu0
        %v586 = vpack.c.bf16 %v580, %v580
        %v587 = vpack.c.bf16 %v582, %v582
        %v588 = vld [vmem:[#allocation2] sm:$0xff]
        %v589 = vpack.c.bf16 %v588, %v588
        %590 = vmatprep.subr.bf16.mxu0 0
        %591 = vmatpush1.bf16.xpose.msra.mxu0 %v586
        %592 = vmatprep.subr.bf16.mxu0 0
        %593 = vmatpush1.bf16.xpose.msra.mxu0 0
        %594 = vmatprep.subr.bf16.mxu0 0
        %595 = vmatpush1.bf16.xpose.msra.mxu0 0
        %596 = vmatprep.subr.bf16.mxu0 0
        %597 = vmatpush1.bf16.xpose.msra.mxu0 0
        %598 = vmatprep.subr.bf16.mxu0 0
        %599 = vmatpush1.bf16.xpose.msra.mxu0 0
        %600 = vmatprep.subr.bf16.mxu0 0
        %601 = vmatpush1.bf16.xpose.msra.mxu0 0
        %602 = vmatprep.subr.bf16.mxu0 0
        %603 = vmatpush1.bf16.xpose.msra.mxu0 0
        %604 = vmatprep.subr.bf16.mxu0 0
        %605 = vmatpush1.bf16.xpose.msra.mxu0 0
        %606 = vmatprep.subr.bf16.mxu0 0
        %607 = vmatpush1.bf16.xpose.msra.mxu0 0
        %608 = vmatprep.subr.bf16.mxu0 0
        %609 = vmatpush1.bf16.xpose.msra.mxu0 0
        %610 = vmatprep.subr.bf16.mxu0 0
        %611 = vmatpush1.bf16.xpose.msra.mxu0 0
        %612 = vmatprep.subr.bf16.mxu0 0
        %613 = vmatpush1.bf16.xpose.msra.mxu0 0
        %614 = vmatprep.subr.bf16.mxu0 0
        %615 = vmatpush1.bf16.xpose.msra.mxu0 0
        %616 = vmatprep.subr.bf16.mxu0 0
        %617 = vmatpush1.bf16.xpose.msra.mxu0 0
        %618 = vmatprep.subr.bf16.mxu0 0
        %619 = vmatpush1.bf16.xpose.msra.mxu0 0
        %620 = vmatprep.subr.bf16.mxu0 0
        %621 = vmatpush1.bf16.xpose.msra.mxu0 0
        %622 = vmatprep.mubr.bf16.mxu0 0
        %623 = vmatmul.mubr.bf16.gmra.mrb[0].mxu0 %v589
        %v624 = vpop.f32.mrb[0].mxu0
        %v625 = vadd.f32 0.0, %v624
        %v626 = vpop.f32.mrb[0].mxu0
        %v627 = vpop.f32.mrb[0].mxu0
        %v628 = vpop.f32.mrb[0].mxu0
        %629 = vdwg.mxu0
        %v630 = vmul.f32 %v625, 0.17677669
        %v631 = vld [vmem:[%s425] sm:$0xff]
        %vm632 = vcmp.eq.s32.totalorder %v631, 0
        %v633 = vsel %vm632, 1e-06, %v630
        %v634 = vld [vmem:[#allocation3] sm:$0xff]
        %vm635 = vcmask 64512
        %v636 = vsel %vm635, %v633, -inf
        %637 = vmax.xlane.f32.xlu0 %v636
        %v638 = vpop.xlane.xlu0 %637
        %v639 = vmax.f32 %v634, %v638
        %v640 = vsub.f32 %v634, %v639
        %v641 = vmul.f32 %v640, 1.442695
        %v642 = vpow.pop %v641
        %644 = vset.pattern.permute.xlu0 0
        %645 = vperm.xlu0 %644, %v639
        %v646 = vpop.permute.xlu0 %645
        %v648 = vsub.f32 %v633, %v646
        %v649 = vmul.f32 %v648, 1.442695
        %v650 = vpow.pop %v649
        %v651 = vld [vmem:[#allocation4] sm:$0xff]
        %v652 = vmul.f32 %v642, %v651
        %v653 = vsel %vm635, %v650, 0.0
        %654 = vadd.xlane.f32.xlu0 %v653
        %v655 = vpop.xlane.xlu0 %654
        %v656 = vadd.f32 %v652, %v655
        %vm657 = vcmask 7168
        %658 = vst.msk [vmem:[#allocation4] sm:$0xff] %vm657, %v656
        %v659 = vld [vmem:[#allocation5] sm:$0xff]
        %661 = vset.pattern.permute.xlu0 0
        %662 = vperm.xlu0 %661, %v642
        %v663 = vpop.permute.xlu0 %662
        %v665 = vmul.f32 %v663, %v659
        %v666 = vpack.c.bf16 %v650, %v650
        %v668 = vsel %vm635, %v666, 0
        %vm670 = vcmask 1043456
        %v672 = vsel %vm670, %v587, 0
        %674 = vmatprep.subr.bf16.mxu0 0
        %675 = vmatpush1.bf16.msra.mxu0 %v672
        %676 = vmatprep.subr.bf16.mxu0 0
        %677 = vmatpush1.bf16.msra.mxu0 0
        %678 = vmatprep.subr.bf16.mxu0 0
        %679 = vmatpush1.bf16.msra.mxu0 0
        %680 = vmatprep.subr.bf16.mxu0 0
        %681 = vmatpush1.bf16.msra.mxu0 0
        %682 = vmatprep.subr.bf16.mxu0 0
        %683 = vmatpush1.bf16.msra.mxu0 0
        %684 = vmatprep.subr.bf16.mxu0 0
        %685 = vmatpush1.bf16.msra.mxu0 0
        %686 = vmatprep.subr.bf16.mxu0 0
        %687 = vmatpush1.bf16.msra.mxu0 0
        %688 = vmatprep.subr.bf16.mxu0 0
        %689 = vmatpush1.bf16.msra.mxu0 0
        %690 = vmatprep.subr.bf16.mxu0 0
        %691 = vmatpush1.bf16.msra.mxu0 0
        %692 = vmatprep.subr.bf16.mxu0 0
        %693 = vmatpush1.bf16.msra.mxu0 0
        %694 = vmatprep.subr.bf16.mxu0 0
        %695 = vmatpush1.bf16.msra.mxu0 0
        %696 = vmatprep.subr.bf16.mxu0 0
        %697 = vmatpush1.bf16.msra.mxu0 0
        %698 = vmatprep.subr.bf16.mxu0 0
        %699 = vmatpush1.bf16.msra.mxu0 0
        %700 = vmatprep.subr.bf16.mxu0 0
        %701 = vmatpush1.bf16.msra.mxu0 0
        %702 = vmatprep.subr.bf16.mxu0 0
        %703 = vmatpush1.bf16.msra.mxu0 0
        %704 = vmatprep.subr.bf16.mxu0 0
        %705 = vmatpush1.bf16.msra.mxu0 0
        %706 = vmatprep.mubr.bf16.mxu0 0
        %707 = vmatmul.mubr.bf16.gmra.mrb[0].mxu0 %v668
        %v708 = vpop.f32.mrb[0].mxu0
        %v709 = vadd.f32 0.0, %v708
        %v710 = vpop.f32.mrb[0].mxu0
        %v711 = vpop.f32.mrb[0].mxu0
        %v712 = vpop.f32.mrb[0].mxu0
        %713 = vdwg.mxu0
        %v714 = vadd.f32 %v665, %v709
        %715 = vst [vmem:[#allocation5] sm:$0xff] %v714
        %716 = vst.msk [vmem:[#allocation3] sm:$0xff] %vm657, %v639
        // Predicated region
        $region69: #{tpu_custom_call.1} parent=47 // pred_check
          %p717 = pneg %p427
        $region70: #{tpu_custom_call.1} parent=47 // pred_check_branch
          %719 = sbr.rel (%p717) target = $region72
        $region71: #{tpu_custom_call.1} parent=47 // pred_region
          %v720 = vld [vmem:[#allocation4] sm:$0xff]
          %v721 = vrcp.pop %v720
          %v722 = vmul.f32 %v720, %v721
          %v723 = vsub.f32 2.0, %v722
          %v724 = vmul.f32 %v721, %v723
          %v725 = vld [vmem:[#allocation5] sm:$0xff]
          %727 = vset.pattern.permute.xlu0 0
          %728 = vperm.xlu0 %727, %v724
          %v729 = vpop.permute.xlu0 %728
          %v731 = vmul.f32 %v725, %v729
          %732 = vst [vmem:[%s415] sm:$0xff] %v731
        $region72: #{tpu_custom_call.1} parent=47 // pred_fallthru
          _
        %s733 = sand.u32 %s227, 1
        %s734 = scalar_lea.sflag [#allocation8], %s733
        %s735 = sand.u32 %s227, 1
        %s736 = smul.addr %s735, 8
        %s737 = scalar_lea.vmem [#allocation14], %s736
        // Predicated region
        $region73: #{tpu_custom_call.1} parent=47 // pred_check
          %p738 = pneg %p237
        $region74: #{tpu_custom_call.1} parent=47 // pred_check_branch
          %740 = sbr.rel (%p738) target = $region76
        $region75: #{tpu_custom_call.1} parent=47 // pred_region
          %s742 = ssub.s32 128, 128
          %743 = vsyncadd %s734, %s742
          %s744 = sadd.s32 %s34, %s33
          %s745 = smul.addr %s744, 128
          %s746 = scalar_lea.hbm %s7, %s745
          %s748 = sshll.u32 %s737, 4
          %s749 = int_to_ptr.vmem [resolvable:$true] %s748
          %751 = dma.vmem_to_hbm [thread:$0]  %s749, 128, %s746, %s734
        $region76: #{tpu_custom_call.1} parent=47 // pred_fallthru
          _
      $region48: #{tpu_custom_call.1} parent=5 // pred_fallthru
        _
      %p752 = scmp.le.s32.totalorder 2, %s23
      // Predicated region
      $region77: #{tpu_custom_call.1} parent=5 // pred_check
        %p753 = pneg %p752
      $region78: #{tpu_custom_call.1} parent=5 // pred_check_branch
        %755 = sbr.rel (%p753) target = $region80
      $region79: #{tpu_custom_call.1} parent=5 // pred_region
        %s756 = ssub.s32 %s23, 2
        // Predicated region
        $region81: #{tpu_custom_call.1} parent=79 // pred_check
          %p757 = pneg %p243
        $region82: #{tpu_custom_call.1} parent=79 // pred_check_branch
          %759 = sbr.rel (%p757) target = $region84
        $region83: #{tpu_custom_call.1} parent=79 // pred_region
          %s760 = sand.u32 %s228, 1
          %s761 = scalar_lea.sflag [#allocation8], %s760
          %s762 = sand.u32 %s228, 1
          %s763 = smul.addr %s762, 8
          %s764 = scalar_lea.vmem [#allocation14], %s763
          %765 = dma.done %s761, 128
        $region84: #{tpu_custom_call.1} parent=79 // pred_fallthru
          _
      $region80: #{tpu_custom_call.1} parent=5 // pred_fallthru
        _
    $region6: #{tpu_custom_call.1} parent=1 // loop_footer
      %s27 = sadd.s32 1, %s23
    $region7: #{tpu_custom_call.1} parent=1 // loop_footer_branch
      %22 = sbr.rel target = $region3
    $region8: #{tpu_custom_call.1} parent=1 // loop_exit
      _
    %766 = vsyncpa [#allocation7], 1
    %s767 = scalar_lea.sflag [#allocation7], 1
    %768 = vsyncpa %s767, 1
    %769 = vsyncpa [#allocation10], 1
    %s770 = scalar_lea.sflag [#allocation10], 1
    %771 = vsyncpa %s770, 1
    %772 = vsyncpa [#allocation13], 1
    %773 = vsyncpa [#allocation8], 1
    %s774 = scalar_lea.sflag [#allocation8], 1
    %775 = vsyncpa %s774, 1

// kernel: tpu_custom_call.1
$region0: #{tpu_custom_call.1}
  #allocation0 [shape = 'u32[]', space=smem, size = 0x4, offset = 0x4, fixed_abs, tag = 'smem constant byte address 0x4 - core index']
  #allocation1 [shape = 'u32[144,128]{1,0:T(1,128)}', space=vmem, size = 0x12000, scoped, tag = 'internal scratch']
  #allocation2 [shape = 'f32[8,128]{1,0:T(8,128)}', space=vmem, size = 0x1000, scoped, tag = 'scratch operand']
  #allocation3 [shape = 'f32[8,1]{1,0:T(8,128)}', space=vmem, size = 0x1000, scoped, tag = 'scratch operand']
  #allocation4 [shape = 'f32[8,1]{1,0:T(8,128)}', space=vmem, size = 0x1000, scoped, tag = 'scratch operand']
  #allocation5 [shape = 'f32[8,128]{1,0:T(8,128)}', space=vmem, size = 0x1000, scoped, tag = 'scratch operand']
  %s0 = inlined_call_operand.hbm [shape: bf16[2,8,32], index: 0, kind: input, shape index: {}]
  %s1 = inlined_call_operand.hbm [shape: bf16[2,8,32], index: 1, kind: input, shape index: {}]
  %s2 = inlined_call_operand.hbm [shape: bf16[32,128], index: 2, kind: input, shape index: {}]
  %s3 = inlined_call_operand.hbm [shape: bf16[32,256], index: 3, kind: input, shape index: {}]
  %s4 = inlined_call_operand.vmem [shape: f32[1,128], index: 4, kind: input, shape index: {}]
  %s5 = inlined_call_operand.vmem [shape: f32[1,256], index: 5, kind: input, shape index: {}]
  %s6 = inlined_call_operand.vmem [shape: s32[2,8,8], index: 6, kind: input, shape index: {}]
  %s7 = inlined_call_operand.hbm [shape: f32[2,8,128], index: 7, kind: output, shape index: {}]
  %s8 = sld [smem:[#allocation0]]
  $region85: #{tpu_custom_call.1} parent=0
    _
  %s10 = ssub.s32 1, %s8
  %s11 = scalar_select 0, %s10, %s8
  $region1: #{tpu_custom_call.1} parent=0
    #allocation6 [shape = 'u8[4096]{0}', space=vmem, size = 0x1000, scoped, tag = 'input window, operand 0']
    #allocation7 [shape = 's32[2]{0}', space=sflag, size = 0x8, scoped, tag = 'scoped memory for tpu_custom_call.1']
    #allocation8 [shape = 's32[2]{0}', space=sflag, size = 0x8, scoped, tag = 'scoped memory for tpu_custom_call.1']
    #allocation9 [shape = 'u8[4096]{0}', space=vmem, size = 0x1000, scoped, tag = 'input window, operand 1']
    #allocation10 [shape = 's32[2]{0}', space=sflag, size = 0x8, scoped, tag = 'scoped memory for tpu_custom_call.1']
    #allocation11 [shape = 'u8[8192]{0}', space=vmem, size = 0x2000, scoped, tag = 'input window, operand 2, single buffered']
    #allocation12 [shape = 'u8[16384]{0}', space=vmem, size = 0x4000, scoped, tag = 'input window, operand 3, single buffered']
    #allocation13 [shape = 's32[1]{0}', space=sflag, size = 0x4, scoped, tag = 'scoped memory for tpu_custom_call.1']
    #allocation14 [shape = 'u8[8192]{0}', space=vmem, size = 0x2000, scoped, tag = 'output window, operand 0']
    %12 = vsyncpa [#allocation7], 0
    %s13 = scalar_lea.sflag [#allocation7], 1
    %14 = vsyncpa %s13, 0
    %15 = vsyncpa [#allocation10], 0
    %s16 = scalar_lea.sflag [#allocation10], 1
    %17 = vsyncpa %s16, 0
    %18 = vsyncpa [#allocation13], 0
    %19 = vsyncpa [#allocation8], 0
    %s20 = scalar_lea.sflag [#allocation8], 1
    %21 = vsyncpa %s20, 0
    loop: start=0, step=1, limit=4
    $region2: #{tpu_custom_call.1} parent=1 // loop_pre_header
      _
    $region3: #{tpu_custom_call.1} parent=1 // loop_header
      %s23 = sphi 0, %s27
      %p24 = scmp.ge.s32.totalorder %s23, 4
      %s30 = sphi 0, %s49
      %s31 = sphi 0, %s45
      %s32 = sphi 0, %s41
      %s33 = sphi 0, %s30
      %s34 = sphi 0, %s31
      %s35 = sphi 0, %s32
      %s36 = sphi 0, %s33
      %s37 = sphi 0, %s34
      %s38 = sphi 0, %s35
      %s54 = sphi 0, %s56
      %s57 = sphi 0, %s54
      %s58 = sphi 0, %s57
      %s74 = sphi 0, %s58
      %s82 = sphi 0, %s84
      %s85 = sphi 0, %s82
      %s86 = sphi 0, %s85
      %s102 = sphi 0, %s86
      %s106 = sphi 0, %s106
      %s108 = sphi 0, %s106
      %s109 = sphi 0, %s108
      %s123 = sphi 0, %s109
      %s127 = sphi 0, %s127
      %s129 = sphi 0, %s127
      %s130 = sphi 0, %s129
      %s144 = sphi 0, %s130
      %s148 = sphi 0, %s148
      %s150 = sphi 0, %s148
      %s151 = sphi 0, %s150
      %s165 = sphi 0, %s151
      %s169 = sphi 0, %s169
      %s171 = sphi 0, %s169
      %s172 = sphi 0, %s171
      %s186 = sphi 0, %s172
      %s196 = sphi 0, %s198
      %s199 = sphi 0, %s196
      %s200 = sphi 0, %s199
      %s216 = sphi 0, %s200
      %s224 = sphi 0, %s226
      %s227 = sphi 0, %s224
      %s228 = sphi 0, %s227
      %s244 = sphi 0, %s228
    $region4: #{tpu_custom_call.1} parent=1 // loop_header_branch
      %26 = sbr.rel (%p24) target = $region8
    $region5: #{tpu_custom_call.1} parent=1 // loop_body
      %s28 = ssub.s32 %s23, 1
      %s29 = ssub.s32 %s23, 2
      %s39 = sadd.s32 1, %s32
      %p40 = scmp.ge.s32.totalorder %s39, 1
      %s41 = scalar_select %p40, 0, %s39
      %s42 = sadd.s32 1, %s31
      %s43 = scalar_select %p40, %s42, %s31
      %p44 = scmp.ge.s32.totalorder %s43, 1
      %s45 = scalar_select %p44, 0, %s43
      %s46 = sadd.s32 1, %s30
      %s47 = scalar_select %p44, %s46, %s30
      %p48 = scmp.ge.s32.totalorder %s47, 2
      %s49 = scalar_select %p48, 0, %s47
      %s50 = ssub.s32 %s30, %s49
      %s51 = ssub.s32 %s31, %s45
      %s52 = sor.u32 %s50, %s51
      %p53 = scmp.eq.s32.totalorder %s52, 0
      %s55 = sadd.s32 %s54, 1
      %s56 = scalar_select %p53, %s54, %s55
      %p59 = pneg %p53
      %p60 = scmp.eq.s32.totalorder %s23, 1
      %p61 = por %p59, %p60
      %p62 = scmp.ne.s32.totalorder %s54, %s57
      %p63 = scmp.eq.s32.totalorder %s23, 0
      %p64 = por %p62, %p63
      %p65 = scmp.ne.s32.totalorder %s54, %s57
      %p66 = scmp.eq.s32.totalorder %s28, 1
      %p67 = por %p65, %p66
      %p68 = scmp.ne.s32.totalorder %s57, %s58
      %p69 = scmp.eq.s32.totalorder %s28, 0
      %p70 = por %p68, %p69
      %p71 = scmp.ne.s32.totalorder %s57, %s58
      %p72 = scmp.eq.s32.totalorder %s29, 1
      %p73 = por %p71, %p72
      %p75 = scmp.ne.s32.totalorder %s58, %s74
      %p76 = scmp.eq.s32.totalorder %s29, 0
      %p77 = por %p75, %p76
      %s78 = ssub.s32 %s30, %s49
      %s79 = ssub.s32 %s32, %s41
      %s80 = sor.u32 %s78, %s79
      %p81 = scmp.eq.s32.totalorder %s80, 0
      %s83 = sadd.s32 %s82, 1
      %s84 = scalar_select %p81, %s82, %s83
      %p87 = pneg %p81
      %p88 = scmp.eq.s32.totalorder %s23, 1
      %p89 = por %p87, %p88
      %p90 = scmp.ne.s32.totalorder %s82, %s85
      %p91 = scmp.eq.s32.totalorder %s23, 0
      %p92 = por %p90, %p91
      %p93 = scmp.ne.s32.totalorder %s82, %s85
      %p94 = scmp.eq.s32.totalorder %s28, 1
      %p95 = por %p93, %p94
      %p96 = scmp.ne.s32.totalorder %s85, %s86
      %p97 = scmp.eq.s32.totalorder %s28, 0
      %p98 = por %p96, %p97
      %p99 = scmp.ne.s32.totalorder %s85, %s86
      %p100 = scmp.eq.s32.totalorder %s29, 1
      %p101 = por %p99, %p100
      %p103 = scmp.ne.s32.totalorder %s86, %s102
      %p104 = scmp.eq.s32.totalorder %s29, 0
      %p105 = por %p103, %p104
      %s107 = sadd.s32 %s106, 1
      %p110 = scmp.eq.s32.totalorder %s23, 1
      %p111 = scmp.ne.s32.totalorder %s106, %s108
      %p112 = scmp.eq.s32.totalorder %s23, 0
      %p113 = por %p111, %p112
      %p114 = scmp.ne.s32.totalorder %s106, %s108
      %p115 = scmp.eq.s32.totalorder %s28, 1
      %p116 = por %p114, %p115
      %p117 = scmp.ne.s32.totalorder %s108, %s109
      %p118 = scmp.eq.s32.totalorder %s28, 0
      %p119 = por %p117, %p118
      %p120 = scmp.ne.s32.totalorder %s108, %s109
      %p121 = scmp.eq.s32.totalorder %s29, 1
      %p122 = por %p120, %p121
      %p124 = scmp.ne.s32.totalorder %s109, %s123
      %p125 = scmp.eq.s32.totalorder %s29, 0
      %p126 = por %p124, %p125
      %s128 = sadd.s32 %s127, 1
      %p131 = scmp.eq.s32.totalorder %s23, 1
      %p132 = scmp.ne.s32.totalorder %s127, %s129
      %p133 = scmp.eq.s32.totalorder %s23, 0
      %p134 = por %p132, %p133
      %p135 = scmp.ne.s32.totalorder %s127, %s129
      %p136 = scmp.eq.s32.totalorder %s28, 1
      %p137 = por %p135, %p136
      %p138 = scmp.ne.s32.totalorder %s129, %s130
      %p139 = scmp.eq.s32.totalorder %s28, 0
      %p140 = por %p138, %p139
      %p141 = scmp.ne.s32.totalorder %s129, %s130
      %p142 = scmp.eq.s32.totalorder %s29, 1
      %p143 = por %p141, %p142
      %p145 = scmp.ne.s32.totalorder %s130, %s144
      %p146 = scmp.eq.s32.totalorder %s29, 0
      %p147 = por %p145, %p146
      %s149 = sadd.s32 %s148, 1
      %p152 = scmp.eq.s32.totalorder %s23, 1
      %p153 = scmp.ne.s32.totalorder %s148, %s150
      %p154 = scmp.eq.s32.totalorder %s23, 0
      %p155 = por %p153, %p154
      %p156 = scmp.ne.s32.totalorder %s148, %s150
      %p157 = scmp.eq.s32.totalorder %s28, 1
      %p158 = por %p156, %p157
      %p159 = scmp.ne.s32.totalorder %s150, %s151
      %p160 = scmp.eq.s32.totalorder %s28, 0
      %p161 = por %p159, %p160
      %p162 = scmp.ne.s32.totalorder %s150, %s151
      %p163 = scmp.eq.s32.totalorder %s29, 1
      %p164 = por %p162, %p163
      %p166 = scmp.ne.s32.totalorder %s151, %s165
      %p167 = scmp.eq.s32.totalorder %s29, 0
      %p168 = por %p166, %p167
      %s170 = sadd.s32 %s169, 1
      %p173 = scmp.eq.s32.totalorder %s23, 1
      %p174 = scmp.ne.s32.totalorder %s169, %s171
      %p175 = scmp.eq.s32.totalorder %s23, 0
      %p176 = por %p174, %p175
      %p177 = scmp.ne.s32.totalorder %s169, %s171
      %p178 = scmp.eq.s32.totalorder %s28, 1
      %p179 = por %p177, %p178
      %p180 = scmp.ne.s32.totalorder %s171, %s172
      %p181 = scmp.eq.s32.totalorder %s28, 0
      %p182 = por %p180, %p181
      %p183 = scmp.ne.s32.totalorder %s171, %s172
      %p184 = scmp.eq.s32.totalorder %s29, 1
      %p185 = por %p183, %p184
      %p187 = scmp.ne.s32.totalorder %s172, %s186
      %p188 = scmp.eq.s32.totalorder %s29, 0
      %p189 = por %p187, %p188
      %s190 = ssub.s32 %s30, %s49
      %s191 = ssub.s32 %s31, %s45
      %s192 = sor.u32 %s190, %s191
      %s193 = ssub.s32 %s32, %s41
      %s194 = sor.u32 %s192, %s193
      %p195 = scmp.eq.s32.totalorder %s194, 0
      %s197 = sadd.s32 %s196, 1
      %s198 = scalar_select %p195, %s196, %s197
      %p201 = pneg %p195
      %p202 = scmp.eq.s32.totalorder %s23, 1
      %p203 = por %p201, %p202
      %p204 = scmp.ne.s32.totalorder %s196, %s199
      %p205 = scmp.eq.s32.totalorder %s23, 0
      %p206 = por %p204, %p205
      %p207 = scmp.ne.s32.totalorder %s196, %s199
      %p208 = scmp.eq.s32.totalorder %s28, 1
      %p209 = por %p207, %p208
      %p210 = scmp.ne.s32.totalorder %s199, %s200
      %p211 = scmp.eq.s32.totalorder %s28, 0
      %p212 = por %p210, %p211
      %p213 = scmp.ne.s32.totalorder %s199, %s200
      %p214 = scmp.eq.s32.totalorder %s29, 1
      %p215 = por %p213, %p214
      %p217 = scmp.ne.s32.totalorder %s200, %s216
      %p218 = scmp.eq.s32.totalorder %s29, 0
      %p219 = por %p217, %p218
      %s220 = ssub.s32 %s30, %s49
      %s221 = ssub.s32 %s31, %s45
      %s222 = sor.u32 %s220, %s221
      %p223 = scmp.eq.s32.totalorder %s222, 0
      %s225 = sadd.s32 %s224, 1
      %s226 = scalar_select %p223, %s224, %s225
      %p229 = pneg %p223
      %p230 = scmp.eq.s32.totalorder %s23, 1
      %p231 = por %p229, %p230
      %p232 = scmp.ne.s32.totalorder %s224, %s227
      %p233 = scmp.eq.s32.totalorder %s23, 0
      %p234 = por %p232, %p233
      %p235 = scmp.ne.s32.totalorder %s224, %s227
      %p236 = scmp.eq.s32.totalorder %s28, 1
      %p237 = por %p235, %p236
      %p238 = scmp.ne.s32.totalorder %s227, %s228
      %p239 = scmp.eq.s32.totalorder %s28, 0
      %p240 = por %p238, %p239
      %p241 = scmp.ne.s32.totalorder %s227, %s228
      %p242 = scmp.eq.s32.totalorder %s29, 1
      %p243 = por %p241, %p242
      %p245 = scmp.ne.s32.totalorder %s228, %s244
      %p246 = scmp.eq.s32.totalorder %s29, 0
      %p247 = por %p245, %p246
      %p248 = scmp.le.s32.totalorder 1, %s23
      %p249 = scmp.lt.s32.totalorder %s23, 3
      %p250 = pnand %p248, %p249
      %p251 = pneg %p250
      // Predicated region
      $region9: #{tpu_custom_call.1} parent=5 // pred_check
        _
      $region10: #{tpu_custom_call.1} parent=5 // pred_check_branch
        %253 = sbr.rel (%p250) target = $region12
      $region11: #{tpu_custom_call.1} parent=5 // pred_region
        %s254 = ssub.s32 %s23, 1
        // Predicated region
        $region13: #{tpu_custom_call.1} parent=11 // pred_check
          %p255 = pneg %p119
        $region14: #{tpu_custom_call.1} parent=11 // pred_check_branch
          %257 = sbr.rel (%p255) target = $region16
        $region15: #{tpu_custom_call.1} parent=11 // pred_region
          %s259 = ssub.s32 256, 256
          %260 = vsyncadd [#allocation10], %s259
          %s261 = sshll.u32 [#allocation11], 4
          %s262 = int_to_ptr.vmem [resolvable:$true] %s261
          %267 = dma.hbm_to_vmem [thread:$0]  %s2, 256, %s262, [#allocation10], 64, 64, 4
        $region16: #{tpu_custom_call.1} parent=11 // pred_fallthru
          _
        // Predicated region
        $region17: #{tpu_custom_call.1} parent=11 // pred_check
          %p268 = pneg %p140
        $region18: #{tpu_custom_call.1} parent=11 // pred_check_branch
          %270 = sbr.rel (%p268) target = $region20
        $region19: #{tpu_custom_call.1} parent=11 // pred_region
          %s272 = ssub.s32 512, 512
          %273 = vsyncadd [#allocation13], %s272
          %s274 = sshll.u32 [#allocation12], 4
          %s275 = int_to_ptr.vmem [resolvable:$true] %s274
          %280 = dma.hbm_to_vmem [thread:$0]  %s3, 512, %s275, [#allocation13], 128, 128, 8
        $region20: #{tpu_custom_call.1} parent=11 // pred_fallthru
          _
        // Predicated region
        $region21: #{tpu_custom_call.1} parent=11 // pred_check
          %p281 = pneg %p161
        $region22: #{tpu_custom_call.1} parent=11 // pred_check_branch
          %283 = sbr.rel (%p281) target = $region24
        $region23: #{tpu_custom_call.1} parent=11 // pred_region
          _
        $region24: #{tpu_custom_call.1} parent=11 // pred_fallthru
          _
        // Predicated region
        $region25: #{tpu_custom_call.1} parent=11 // pred_check
          %p284 = pneg %p182
        $region26: #{tpu_custom_call.1} parent=11 // pred_check_branch
          %286 = sbr.rel (%p284) target = $region28
        $region27: #{tpu_custom_call.1} parent=11 // pred_region
          _
        $region28: #{tpu_custom_call.1} parent=11 // pred_fallthru
          _
      $region12: #{tpu_custom_call.1} parent=5 // pred_fallthru
        _
      %p287 = scmp.lt.s32.totalorder %s23, 2
      // Predicated region
      $region29: #{tpu_custom_call.1} parent=5 // pred_check
        %p288 = pneg %p287
      $region30: #{tpu_custom_call.1} parent=5 // pred_check_branch
        %290 = sbr.rel (%p288) target = $region32
      $region31: #{tpu_custom_call.1} parent=5 // pred_region
        // Predicated region
        $region33: #{tpu_custom_call.1} parent=31 // pred_check
          %p291 = pneg %p64
        $region34: #{tpu_custom_call.1} parent=31 // pred_check_branch
          %293 = sbr.rel (%p291) target = $region36
        $region35: #{tpu_custom_call.1} parent=31 // pred_region
          %s294 = sand.u32 %s54, 1
          %s295 = scalar_lea.sflag [#allocation7], %s294
          %s296 = sand.u32 %s54, 1
          %s297 = smul.addr %s296, 4
          %s298 = scalar_lea.vmem [#allocation6], %s297
          %s300 = ssub.s32 64, 64
          %301 = vsyncadd %s295, %s300
          %s302 = sadd.s32 %s31, %s30
          %s303 = smul.addr %s302, 64
          %s304 = scalar_lea.hbm %s0, %s303
          %s306 = sshll.u32 %s298, 4
          %s307 = int_to_ptr.vmem [resolvable:$true] %s306
          %309 = dma.hbm_to_vmem [thread:$0]  %s304, 64, %s307, %s295
        $region36: #{tpu_custom_call.1} parent=31 // pred_fallthru
          _
        // Predicated region
        $region37: #{tpu_custom_call.1} parent=31 // pred_check
          %p310 = pneg %p92
        $region38: #{tpu_custom_call.1} parent=31 // pred_check_branch
          %312 = sbr.rel (%p310) target = $region40
        $region39: #{tpu_custom_call.1} parent=31 // pred_region
          %s313 = sand.u32 %s23, 1
          %s314 = scalar_lea.sflag [#allocation10], %s313
          %s315 = sand.u32 %s82, 1
          %s316 = smul.addr %s315, 4
          %s317 = scalar_lea.vmem [#allocation9], %s316
          %s319 = ssub.s32 64, 64
          %320 = vsyncadd %s314, %s319
          %s321 = sadd.s32 %s32, %s30
          %s322 = smul.addr %s321, 64
          %s323 = scalar_lea.hbm %s1, %s322
          %s325 = sshll.u32 %s317, 4
          %s326 = int_to_ptr.vmem [resolvable:$true] %s325
          %328 = dma.hbm_to_vmem [thread:$0]  %s323, 64, %s326, %s314
        $region40: #{tpu_custom_call.1} parent=31 // pred_fallthru
          _
        // Predicated region
        $region41: #{tpu_custom_call.1} parent=31 // pred_check
          %p329 = pneg %p206
        $region42: #{tpu_custom_call.1} parent=31 // pred_check_branch
          %331 = sbr.rel (%p329) target = $region44
        $region43: #{tpu_custom_call.1} parent=31 // pred_region
          %p332 = scmp.lt.s32.totalorder %s30, 1
          %s333 = scalar_select %p332, %s30, 1
          %p334 = scmp.lt.s32.totalorder %s31, 0
          %s335 = scalar_select %p334, %s31, 0
          %p336 = scmp.lt.s32.totalorder %s32, 0
          %s337 = scalar_select %p336, %s32, 0
          %s338 = sadd.s32 %s337, %s335
          %s339 = sadd.s32 %s338, %s333
          %s340 = smul.addr %s339, 8
          %s341 = scalar_lea.vmem %s6, %s340
        $region44: #{tpu_custom_call.1} parent=31 // pred_fallthru
          _
      $region32: #{tpu_custom_call.1} parent=5 // pred_fallthru
        _
      %p342 = scmp.le.s32.totalorder 1, %s23
      %p343 = scmp.lt.s32.totalorder %s23, 3
      %p344 = pnand %p342, %p343
      %p345 = pneg %p344
      // Predicated region
      $region45: #{tpu_custom_call.1} parent=5 // pred_check
        _
      $region46: #{tpu_custom_call.1} parent=5 // pred_check_branch
        %347 = sbr.rel (%p344) target = $region48
      $region47: #{tpu_custom_call.1} parent=5 // pred_region
        %s348 = ssub.s32 %s23, 1
        %s349 = sand.u32 %s57, 1
        %s350 = scalar_lea.sflag [#allocation7], %s349
        %s351 = sand.u32 %s57, 1
        %s352 = smul.addr %s351, 4
        %s353 = scalar_lea.vmem [#allocation6], %s352
        // Predicated region
        $region49: #{tpu_custom_call.1} parent=47 // pred_check
          %p354 = pneg %p70
        $region50: #{tpu_custom_call.1} parent=47 // pred_check_branch
          %356 = sbr.rel (%p354) target = $region52
        $region51: #{tpu_custom_call.1} parent=47 // pred_region
          %357 = dma.done %s350, 64
        $region52: #{tpu_custom_call.1} parent=47 // pred_fallthru
          _
        %s358 = sand.u32 %s28, 1
        %s359 = scalar_lea.sflag [#allocation10], %s358
        %s360 = sand.u32 %s85, 1
        %s361 = smul.addr %s360, 4
        %s362 = scalar_lea.vmem [#allocation9], %s361
        // Predicated region
        $region53: #{tpu_custom_call.1} parent=47 // pred_check
          %p363 = pneg %p98
        $region54: #{tpu_custom_call.1} parent=47 // pred_check_branch
          %365 = sbr.rel (%p363) target = $region56
        $region55: #{tpu_custom_call.1} parent=47 // pred_region
          %366 = dma.done %s359, 64
        $region56: #{tpu_custom_call.1} parent=47 // pred_fallthru
          _
        // Predicated region
        $region57: #{tpu_custom_call.1} parent=47 // pred_check
          %p367 = pneg %p119
        $region58: #{tpu_custom_call.1} parent=47 // pred_check_branch
          %369 = sbr.rel (%p367) target = $region60
        $region59: #{tpu_custom_call.1} parent=47 // pred_region
          %370 = dma.done [#allocation10], 256
        $region60: #{tpu_custom_call.1} parent=47 // pred_fallthru
          _
        // Predicated region
        $region61: #{tpu_custom_call.1} parent=47 // pred_check
          %p371 = pneg %p140
        $region62: #{tpu_custom_call.1} parent=47 // pred_check_branch
          %373 = sbr.rel (%p371) target = $region64
        $region63: #{tpu_custom_call.1} parent=47 // pred_region
          %374 = dma.done [#allocation13], 512
        $region64: #{tpu_custom_call.1} parent=47 // pred_fallthru
          _
        %s375 = sand.u32 %s57, 1
        %s376 = scalar_lea.sflag [#allocation7], %s375
        %s377 = sand.u32 %s57, 1
        %s378 = smul.addr %s377, 4
        %s379 = scalar_lea.vmem [#allocation6], %s378
        %p380 = pneg %p70
        %p381 = pneg %p67
        %s382 = sand.u32 %s28, 1
        %s383 = scalar_lea.sflag [#allocation10], %s382
        %s384 = sand.u32 %s85, 1
        %s385 = smul.addr %s384, 4
        %s386 = scalar_lea.vmem [#allocation9], %s385
        %p387 = pneg %p98
        %p388 = pneg %p95
        %p389 = pneg %p119
        %p390 = pneg %p116
        %p391 = pneg %p140
        %p392 = pneg %p137
        %p393 = pneg %p161
        %p394 = pneg %p158
        %p395 = pneg %p182
        %p396 = pneg %p179
        %p397 = scmp.lt.s32.totalorder %s33, 1
        %s398 = scalar_select %p397, %s33, 1
        %p399 = scmp.lt.s32.totalorder %s34, 0
        %s400 = scalar_select %p399, %s34, 0
        %p401 = scmp.lt.s32.totalorder %s35, 0
        %s402 = scalar_select %p401, %s35, 0
        %s403 = sadd.s32 %s402, %s400
        %s404 = sadd.s32 %s403, %s398
        %s405 = smul.addr %s404, 8
        %s406 = scalar_lea.vmem %s6, %s405
        %p407 = pneg %p212
        %p408 = pneg %p209
        %p409 = pneg %p240
        %p410 = pneg %p237
        %s411 = sand.u32 %s227, 1
        %s412 = scalar_lea.sflag [#allocation8], %s411
        %s413 = sand.u32 %s227, 1
        %s414 = smul.addr %s413, 8
        %s415 = scalar_lea.vmem [#allocation14], %s414
        %p416 = scmp.lt.s32.totalorder %s33, 1
        %s417 = scalar_select %p416, %s33, 1
        %p418 = scmp.lt.s32.totalorder %s34, 0
        %s419 = scalar_select %p418, %s34, 0
        %p420 = scmp.lt.s32.totalorder %s35, 0
        %s421 = scalar_select %p420, %s35, 0
        %s422 = sadd.s32 %s421, %s419
        %s423 = sadd.s32 %s422, %s417
        %s424 = smul.addr %s423, 8
        %s425 = scalar_lea.vmem %s6, %s424
        %p427 = scmp.eq.s32.totalorder %s35, 0
        // Predicated region
        $region65: #{tpu_custom_call.1} parent=47 // pred_check
          %p428 = pneg %p427
        $region66: #{tpu_custom_call.1} parent=47 // pred_check_branch
          %430 = sbr.rel (%p428) target = $region68
        $region67: #{tpu_custom_call.1} parent=47 // pred_region
          %v431 = vld [vmem:[%s353] sm:$0xf]
          %v432 = vld [vmem:[#allocation11] sm:$0xf]
          %v433 = vld [vmem:[#allocation11 + $0x4] sm:$0xf]
          %v434 = vld [vmem:[#allocation11 + $0x8] sm:$0xf]
          %v435 = vld [vmem:[#allocation11 + $0xc] sm:$0xf]
          %v436 = vld [vmem:[%s4] sm:$0x1]
          %v438 = vlaneseq
          %v439 = vshrl.u32 %v438, 7
          %v440 = vsub.s32 0, %v439
          %v441 = vrot.slane %v436, %v440
          %v447 = vunpack.c.l.b16 %v432
          %v448 = vunpack.c.l.b16 %v433
          %v449 = vunpack.c.l.b16 %v434
          %v450 = vunpack.c.l.b16 %v435
          %v451 = vpack.c.b16 %v448, %v447
          %v452 = vpack.c.b16 %v450, %v449
          %vm455 = vcmask 261120
          %v457 = vsel %vm455, %v431, 0
          %459 = vmatprep.subr.bf16.mxu0 0
          %460 = vmatpush1.bf16.msra.mxu0 %v451
          %461 = vmatprep.subr.bf16.mxu0 0
          %462 = vmatpush1.bf16.msra.mxu0 %v452
          %463 = vmatprep.subr.bf16.mxu0 0
          %464 = vmatpush1.bf16.msra.mxu0 0
          %465 = vmatprep.subr.bf16.mxu0 0
          %466 = vmatpush1.bf16.msra.mxu0 0
          %467 = vmatprep.subr.bf16.mxu0 0
          %468 = vmatpush1.bf16.msra.mxu0 0
          %469 = vmatprep.subr.bf16.mxu0 0
          %470 = vmatpush1.bf16.msra.mxu0 0
          %471 = vmatprep.subr.bf16.mxu0 0
          %472 = vmatpush1.bf16.msra.mxu0 0
          %473 = vmatprep.subr.bf16.mxu0 0
          %474 = vmatpush1.bf16.msra.mxu0 0
          %475 = vmatprep.subr.bf16.mxu0 0
          %476 = vmatpush1.bf16.msra.mxu0 0
          %477 = vmatprep.subr.bf16.mxu0 0
          %478 = vmatpush1.bf16.msra.mxu0 0
          %479 = vmatprep.subr.bf16.mxu0 0
          %480 = vmatpush1.bf16.msra.mxu0 0
          %481 = vmatprep.subr.bf16.mxu0 0
          %482 = vmatpush1.bf16.msra.mxu0 0
          %483 = vmatprep.subr.bf16.mxu0 0
          %484 = vmatpush1.bf16.msra.mxu0 0
          %485 = vmatprep.subr.bf16.mxu0 0
          %486 = vmatpush1.bf16.msra.mxu0 0
          %487 = vmatprep.subr.bf16.mxu0 0
          %488 = vmatpush1.bf16.msra.mxu0 0
          %489 = vmatprep.subr.bf16.mxu0 0
          %490 = vmatpush1.bf16.msra.mxu0 0
          %491 = vmatprep.mubr.bf16.mxu0 0
          %492 = vmatmul.mubr.bf16.gmra.mrb[0].mxu0 %v457
          %v493 = vpop.f32.mrb[0].mxu0
          %v494 = vadd.f32 %v441, %v493
          %v495 = vpop.f32.mrb[0].mxu0
          %v496 = vpop.f32.mrb[0].mxu0
          %v497 = vpop.f32.mrb[0].mxu0
          %498 = vdwg.mxu0
          %499 = vst [vmem:[#allocation2] sm:$0xff] %v494
          %vm500 = vcmask 7168
          %501 = vst.msk [vmem:[#allocation3] sm:$0xff] %vm500, -inf
          %502 = vst.msk [vmem:[#allocation4] sm:$0xff] %vm500, 0.0
          %503 = vst [vmem:[#allocation5] sm:$0xff] 0.0
        $region68: #{tpu_custom_call.1} parent=47 // pred_fallthru
          _
        %v504 = vld [vmem:[%s362] sm:$0xf]
        %v505 = vld [vmem:[#allocation12] sm:$0xff]
        %v506 = vld [vmem:[#allocation12 + $0x8] sm:$0xff]
        %v507 = vld [vmem:[#allocation12 + $0x10] sm:$0xff]
        %v508 = vld [vmem:[#allocation12 + $0x18] sm:$0xff]
        %v509 = vld [vmem:[%s5] sm:$0x3]
        %v511 = vlaneseq
        %v512 = vshrl.u32 %v511, 7
        %v513 = vsub.s32 0, %v512
        %v514 = vrot.slane %v509, %v513
        %v515 = vlaneseq
        %v516 = vshrl.u32 %v515, 7
        %v517 = vsub.s32 1, %v516
        %v518 = vrot.slane %v509, %v517
        %v525 = vunpack.c.l.b16 %v505
        %v526 = vunpack.c.h.b16 %v505
        %v527 = vunpack.c.l.b16 %v506
        %v528 = vunpack.c.h.b16 %v506
        %v529 = vunpack.c.l.b16 %v507
        %v530 = vunpack.c.h.b16 %v507
        %v531 = vunpack.c.l.b16 %v508
        %v532 = vunpack.c.h.b16 %v508
        %v533 = vpack.c.b16 %v527, %v525
        %v534 = vpack.c.b16 %v528, %v526
        %v535 = vpack.c.b16 %v531, %v529
        %v536 = vpack.c.b16 %v532, %v530
        %vm541 = vcmask 261120
        %v543 = vsel %vm541, %v504, 0
        %545 = vmatprep.subr.bf16.mxu0 %v534
        %546 = vmatpush1.bf16.msra.mxu0 %v533
        %547 = vmatprep.subr.bf16.mxu0 %v536
        %548 = vmatpush1.bf16.msra.mxu0 %v535
        %549 = vmatprep.subr.bf16.mxu0 0
        %550 = vmatpush1.bf16.msra.mxu0 0
        %551 = vmatprep.subr.bf16.mxu0 0
        %552 = vmatpush1.bf16.msra.mxu0 0
        %553 = vmatprep.subr.bf16.mxu0 0
        %554 = vmatpush1.bf16.msra.mxu0 0
        %555 = vmatprep.subr.bf16.mxu0 0
        %556 = vmatpush1.bf16.msra.mxu0 0
        %557 = vmatprep.subr.bf16.mxu0 0
        %558 = vmatpush1.bf16.msra.mxu0 0
        %559 = vmatprep.subr.bf16.mxu0 0
        %560 = vmatpush1.bf16.msra.mxu0 0
        %561 = vmatprep.subr.bf16.mxu0 0
        %562 = vmatpush1.bf16.msra.mxu0 0
        %563 = vmatprep.subr.bf16.mxu0 0
        %564 = vmatpush1.bf16.msra.mxu0 0
        %565 = vmatprep.subr.bf16.mxu0 0
        %566 = vmatpush1.bf16.msra.mxu0 0
        %567 = vmatprep.subr.bf16.mxu0 0
        %568 = vmatpush1.bf16.msra.mxu0 0
        %569 = vmatprep.subr.bf16.mxu0 0
        %570 = vmatpush1.bf16.msra.mxu0 0
        %571 = vmatprep.subr.bf16.mxu0 0
        %572 = vmatpush1.bf16.msra.mxu0 0
        %573 = vmatprep.subr.bf16.mxu0 0
        %574 = vmatpush1.bf16.msra.mxu0 0
        %575 = vmatprep.subr.bf16.mxu0 0
        %576 = vmatpush1.bf16.msra.mxu0 0
        %577 = vmatprep.mubr.bf16.mxu0 0
        %578 = vmatmul.mubr.bf16.gmra.mrb[0].mxu0 %v543
        %v579 = vpop.f32.mrb[0].mxu0
        %v580 = vadd.f32 %v514, %v579
        %v581 = vpop.f32.mrb[0].mxu0
        %v582 = vadd.f32 %v518, %v581
        %v583 = vpop.f32.mrb[0].mxu0
        %v584 = vpop.f32.mrb[0].mxu0
        %585 = vdwg.mxu0
        %v586 = vpack.c.bf16 %v580, %v580
        %v587 = vpack.c.bf16 %v582, %v582
        %v588 = vld [vmem:[#allocation2] sm:$0xff]
        %v589 = vpack.c.bf16 %v588, %v588
        %590 = vmatprep.subr.bf16.mxu0 0
        %591 = vmatpush1.bf16.xpose.msra.mxu0 %v586
        %592 = vmatprep.subr.bf16.mxu0 0
        %593 = vmatpush1.bf16.xpose.msra.mxu0 0
        %594 = vmatprep.subr.bf16.mxu0 0
        %595 = vmatpush1.bf16.xpose.msra.mxu0 0
        %596 = vmatprep.subr.bf16.mxu0 0
        %597 = vmatpush1.bf16.xpose.msra.mxu0 0
        %598 = vmatprep.subr.bf16.mxu0 0
        %599 = vmatpush1.bf16.xpose.msra.mxu0 0
        %600 = vmatprep.subr.bf16.mxu0 0
        %601 = vmatpush1.bf16.xpose.msra.mxu0 0
        %602 = vmatprep.subr.bf16.mxu0 0
        %603 = vmatpush1.bf16.xpose.msra.mxu0 0
        %604 = vmatprep.subr.bf16.mxu0 0
        %605 = vmatpush1.bf16.xpose.msra.mxu0 0
        %606 = vmatprep.subr.bf16.mxu0 0
        %607 = vmatpush1.bf16.xpose.msra.mxu0 0
        %608 = vmatprep.subr.bf16.mxu0 0
        %609 = vmatpush1.bf16.xpose.msra.mxu0 0
        %610 = vmatprep.subr.bf16.mxu0 0
        %611 = vmatpush1.bf16.xpose.msra.mxu0 0
        %612 = vmatprep.subr.bf16.mxu0 0
        %613 = vmatpush1.bf16.xpose.msra.mxu0 0
        %614 = vmatprep.subr.bf16.mxu0 0
        %615 = vmatpush1.bf16.xpose.msra.mxu0 0
        %616 = vmatprep.subr.bf16.mxu0 0
        %617 = vmatpush1.bf16.xpose.msra.mxu0 0
        %618 = vmatprep.subr.bf16.mxu0 0
        %619 = vmatpush1.bf16.xpose.msra.mxu0 0
        %620 = vmatprep.subr.bf16.mxu0 0
        %621 = vmatpush1.bf16.xpose.msra.mxu0 0
        %622 = vmatprep.mubr.bf16.mxu0 0
        %623 = vmatmul.mubr.bf16.gmra.mrb[0].mxu0 %v589
        %v624 = vpop.f32.mrb[0].mxu0
        %v625 = vadd.f32 0.0, %v624
        %v626 = vpop.f32.mrb[0].mxu0
        %v627 = vpop.f32.mrb[0].mxu0
        %v628 = vpop.f32.mrb[0].mxu0
        %629 = vdwg.mxu0
        %v630 = vmul.f32 %v625, 0.17677669
        %v631 = vld [vmem:[%s425] sm:$0xff]
        %vm632 = vcmp.eq.s32.totalorder %v631, 0
        %v633 = vsel %vm632, 1e-06, %v630
        %v634 = vld [vmem:[#allocation3] sm:$0xff]
        %vm635 = vcmask 64512
        %v636 = vsel %vm635, %v633, -inf
        %637 = vmax.xlane.f32.xlu0 %v636
        %v638 = vpop.xlane.xlu0 %637
        %v639 = vmax.f32 %v634, %v638
        %v640 = vsub.f32 %v634, %v639
        %v641 = vmul.f32 %v640, 1.442695
        %v642 = vpow.pop %v641
        %644 = vset.pattern.permute.xlu0 0
        %645 = vperm.xlu0 %644, %v639
        %v646 = vpop.permute.xlu0 %645
        %v648 = vsub.f32 %v633, %v646
        %v649 = vmul.f32 %v648, 1.442695
        %v650 = vpow.pop %v649
        %v651 = vld [vmem:[#allocation4] sm:$0xff]
        %v652 = vmul.f32 %v642, %v651
        %v653 = vsel %vm635, %v650, 0.0
        %654 = vadd.xlane.f32.xlu0 %v653
        %v655 = vpop.xlane.xlu0 %654
        %v656 = vadd.f32 %v652, %v655
        %vm657 = vcmask 7168
        %658 = vst.msk [vmem:[#allocation4] sm:$0xff] %vm657, %v656
        %v659 = vld [vmem:[#allocation5] sm:$0xff]
        %661 = vset.pattern.permute.xlu0 0
        %662 = vperm.xlu0 %661, %v642
        %v663 = vpop.permute.xlu0 %662
        %v665 = vmul.f32 %v663, %v659
        %v666 = vpack.c.bf16 %v650, %v650
        %v668 = vsel %vm635, %v666, 0
        %vm670 = vcmask 1043456
        %v672 = vsel %vm670, %v587, 0
        %674 = vmatprep.subr.bf16.mxu0 0
        %675 = vmatpush1.bf16.msra.mxu0 %v672
        %676 = vmatprep.subr.bf16.mxu0 0
        %677 = vmatpush1.bf16.msra.mxu0 0
        %678 = vmatprep.subr.bf16.mxu0 0
        %679 = vmatpush1.bf16.msra.mxu0 0
        %680 = vmatprep.subr.bf16.mxu0 0
        %681 = vmatpush1.bf16.msra.mxu0 0
        %682 = vmatprep.subr.bf16.mxu0 0
        %683 = vmatpush1.bf16.msra.mxu0 0
        %684 = vmatprep.subr.bf16.mxu0 0
        %685 = vmatpush1.bf16.msra.mxu0 0
        %686 = vmatprep.subr.bf16.mxu0 0
        %687 = vmatpush1.bf16.msra.mxu0 0
        %688 = vmatprep.subr.bf16.mxu0 0
        %689 = vmatpush1.bf16.msra.mxu0 0
        %690 = vmatprep.subr.bf16.mxu0 0
        %691 = vmatpush1.bf16.msra.mxu0 0
        %692 = vmatprep.subr.bf16.mxu0 0
        %693 = vmatpush1.bf16.msra.mxu0 0
        %694 = vmatprep.subr.bf16.mxu0 0
        %695 = vmatpush1.bf16.msra.mxu0 0
        %696 = vmatprep.subr.bf16.mxu0 0
        %697 = vmatpush1.bf16.msra.mxu0 0
        %698 = vmatprep.subr.bf16.mxu0 0
        %699 = vmatpush1.bf16.msra.mxu0 0
        %700 = vmatprep.subr.bf16.mxu0 0
        %701 = vmatpush1.bf16.msra.mxu0 0
        %702 = vmatprep.subr.bf16.mxu0 0
        %703 = vmatpush1.bf16.msra.mxu0 0
        %704 = vmatprep.subr.bf16.mxu0 0
        %705 = vmatpush1.bf16.msra.mxu0 0
        %706 = vmatprep.mubr.bf16.mxu0 0
        %707 = vmatmul.mubr.bf16.gmra.mrb[0].mxu0 %v668
        %v708 = vpop.f32.mrb[0].mxu0
        %v709 = vadd.f32 0.0, %v708
        %v710 = vpop.f32.mrb[0].mxu0
        %v711 = vpop.f32.mrb[0].mxu0
        %v712 = vpop.f32.mrb[0].mxu0
        %713 = vdwg.mxu0
        %v714 = vadd.f32 %v665, %v709
        %715 = vst [vmem:[#allocation5] sm:$0xff] %v714
        %716 = vst.msk [vmem:[#allocation3] sm:$0xff] %vm657, %v639
        // Predicated region
        $region69: #{tpu_custom_call.1} parent=47 // pred_check
          %p717 = pneg %p427
        $region70: #{tpu_custom_call.1} parent=47 // pred_check_branch
          %719 = sbr.rel (%p717) target = $region72
        $region71: #{tpu_custom_call.1} parent=47 // pred_region
          %v720 = vld [vmem:[#allocation4] sm:$0xff]
          %v721 = vrcp.pop %v720
          %v722 = vmul.f32 %v720, %v721
          %v723 = vsub.f32 2.0, %v722
          %v724 = vmul.f32 %v721, %v723
          %v725 = vld [vmem:[#allocation5] sm:$0xff]
          %727 = vset.pattern.permute.xlu0 0
          %728 = vperm.xlu0 %727, %v724
          %v729 = vpop.permute.xlu0 %728
          %v731 = vmul.f32 %v725, %v729
          %732 = vst [vmem:[%s415] sm:$0xff] %v731
        $region72: #{tpu_custom_call.1} parent=47 // pred_fallthru
          _
        %s733 = sand.u32 %s227, 1
        %s734 = scalar_lea.sflag [#allocation8], %s733
        %s735 = sand.u32 %s227, 1
        %s736 = smul.addr %s735, 8
        %s737 = scalar_lea.vmem [#allocation14], %s736
        // Predicated region
        $region73: #{tpu_custom_call.1} parent=47 // pred_check
          %p738 = pneg %p237
        $region74: #{tpu_custom_call.1} parent=47 // pred_check_branch
          %740 = sbr.rel (%p738) target = $region76
        $region75: #{tpu_custom_call.1} parent=47 // pred_region
          %s742 = ssub.s32 128, 128
          %743 = vsyncadd %s734, %s742
          %s744 = sadd.s32 %s34, %s33
          %s745 = smul.addr %s744, 128
          %s746 = scalar_lea.hbm %s7, %s745
          %s748 = sshll.u32 %s737, 4
          %s749 = int_to_ptr.vmem [resolvable:$true] %s748
          %751 = dma.vmem_to_hbm [thread:$0]  %s749, 128, %s746, %s734
        $region76: #{tpu_custom_call.1} parent=47 // pred_fallthru
          _
      $region48: #{tpu_custom_call.1} parent=5 // pred_fallthru
        _
      %p752 = scmp.le.s32.totalorder 2, %s23
      // Predicated region
      $region77: #{tpu_custom_call.1} parent=5 // pred_check
        %p753 = pneg %p752
      $region78: #{tpu_custom_call.1} parent=5 // pred_check_branch
        %755 = sbr.rel (%p753) target = $region80
      $region79: #{tpu_custom_call.1} parent=5 // pred_region
        %s756 = ssub.s32 %s23, 2
        // Predicated region
        $region81: #{tpu_custom_call.1} parent=79 // pred_check
          %p757 = pneg %p243
        $region82: #{tpu_custom_call.1} parent=79 // pred_check_branch
          %759 = sbr.rel (%p757) target = $region84
        $region83: #{tpu_custom_call.1} parent=79 // pred_region
          %s760 = sand.u32 %s228, 1
          %s761 = scalar_lea.sflag [#allocation8], %s760
          %s762 = sand.u32 %s228, 1
          %s763 = smul.addr %s762, 8
          %s764 = scalar_lea.vmem [#allocation14], %s763
          %765 = dma.done %s761, 128
        $region84: #{tpu_custom_call.1} parent=79 // pred_fallthru
          _
      $region80: #{tpu_custom_call.1} parent=5 // pred_fallthru
        _
    $region6: #{tpu_custom_call.1} parent=1 // loop_footer
      %s27 = sadd.s32 1, %s23
    $region7: #{tpu_custom_call.1} parent=1 // loop_footer_branch
      %22 = sbr.rel target = $region3
    $region8: #{tpu_custom_call.1} parent=1 // loop_exit
      _
    %766 = vsyncpa [#allocation7], 1
    %s767 = scalar_lea.sflag [#allocation7], 1
    %768 = vsyncpa %s767, 1
    %769 = vsyncpa [#allocation10], 1
    %s770 = scalar_lea.sflag [#allocation10], 1
    %771 = vsyncpa %s770, 1
    %772 = vsyncpa [#allocation13], 1
    %773 = vsyncpa [#allocation8], 1
    %s774 = scalar_lea.sflag [#allocation8], 1
    %775 = vsyncpa %s774, 1

</llo_original>
